<compile_context>
chip_gen: v7x
topology: tpu7x:2x2x1
jax: 0.10.0
libtpu: 0.0.40
codegen_flags: <defaults>
</compile_context>

<pallas_src>
import functools

import jax
import jax.numpy as jnp
from jax import lax
from jax.experimental import pallas as pl
from jax.experimental.pallas import tpu as pltpu

# MLP layer widths: input_dim -> 512 -> 256 -> 128 -> 64 -> 32 -> 16 -> 1
HIDDEN = (512, 256, 128, 64, 32, 16, 1)


def _bias_act(y_f32, b_ref, epilogue_dtype, out_dtype, relu=True):
    """bias-add (+ReLU) epilogue on an f32 MXU result."""
    y = y_f32.astype(epilogue_dtype)
    b = b_ref[...].astype(epilogue_dtype)
    y = y + b
    if relu:
        y = jnp.maximum(y, 0.0)
    return y.astype(out_dtype)


def _mlp_kernel(x_ref,
                w1, b1, w2, b2, w3, b3, w4, b4, w5, b5, w6, b6, w7, b7,
                o_ref, *, epilogue_dtype):
    """Fused forward for one batch tile.

    x_ref : (tile, D) f32      -- untransposed HBM layout, batch on sublanes.
    wi    : (out, in) bf16, bi: (out, 1) f32   (layers 1..6)
    w7    : (16, 1)  f32,  b7: (1, 1)  f32     (final 16->1 layer, VPU path)
    o_ref : (1, tile) f32      -- batch on lanes (lane-dense store).
    """
    xb = x_ref[...].astype(jnp.bfloat16)                      # (tile, D)

    # Layer 1: contract on D of both operands ("trans_b" on the MXU):
    # (512, D) . (tile, D)^T -> (512, tile).  No wrapper transpose needed.
    h = lax.dot_general(w1[...], xb,
                        dimension_numbers=(((1,), (1,)), ((), ())),
                        preferred_element_type=jnp.float32)
    h = _bias_act(h, b1, epilogue_dtype, jnp.bfloat16)

    def linear_relu(h_bf16, w_ref, b_ref,
                    out_dtype=jnp.bfloat16, ep_dtype=epilogue_dtype):
        y = jnp.dot(w_ref[...], h_bf16, preferred_element_type=jnp.float32)
        return _bias_act(y, b_ref, ep_dtype, out_dtype)

    h = linear_relu(h, w2, b2)
    h = linear_relu(h, w3, b3)
    h = linear_relu(h, w4, b4)
    h = linear_relu(h, w5, b5)
    # 32 -> 16 layer: keep f32 (feeds the final VPU layer; avoids an extra
    # bf16 round-trip on a tiny (16, tile) tensor).
    h = linear_relu(h, w6, b6, out_dtype=jnp.float32, ep_dtype=jnp.float32)

    # Final 16 -> 1 Linear (no ReLU) on VPU + XLU sublane reduce.
    y = jnp.sum(h * w7[...], axis=0, keepdims=True) + b7[...]   # (1, tile) f32
    o_ref[...] = y.astype(o_ref.dtype)


def init_params(key, input_dim):
    """PyTorch nn.Linear default init: U[-1/sqrt(fan_in), 1/sqrt(fan_in)]."""
    dims = (input_dim,) + HIDDEN
    params = []
    for i in range(len(HIDDEN)):
        fan_in, fan_out = dims[i], dims[i + 1]
        key, kw, kb = jax.random.split(key, 3)
        bound = 1.0 / jnp.sqrt(fan_in)
        w = jax.random.uniform(kw, (fan_in, fan_out), jnp.float32, -bound, bound)
        b = jax.random.uniform(kb, (1, fan_out), jnp.float32, -bound, bound)
        params.append((w, b))
    return params


def pack_params(params):
    """Convert (w:(in,out) f32, b:(1,out) f32) to the kernel layout, once.

    Layers 0..5: w -> (out, in) bf16, b -> (out, 1) f32.
    Last layer : w stays (16, 1) f32 (VPU path), b -> (1, 1) f32.
    """
    packed = []
    last = len(params) - 1
    for li, (w, b) in enumerate(params):
        if li < last:
            packed.append(jnp.asarray(w.T, jnp.bfloat16))
            packed.append(jnp.asarray(b.reshape(-1, 1), jnp.float32))
        else:
            packed.append(jnp.asarray(w, jnp.float32))
            packed.append(jnp.asarray(b.reshape(1, 1), jnp.float32))
    return tuple(packed)


def _round_up(v, m):
    return -(-v // m) * m


def _default_bf16_epilogue():
    """bf16 VALU exists on v6e / v7x; v5e and older keep an f32 epilogue."""
    try:
        kind = jax.devices()[0].device_kind.lower()
    except Exception:
        return False
    return ("v6" in kind) or ("v7" in kind)


@functools.partial(jax.jit, static_argnames=("batch_tile", "bf16_epilogue"))
def my_model_forward(x, packed_params, *, batch_tile=None, bf16_epilogue=None):
    B, D = x.shape
    if batch_tile is None:
        # Large tiles amortize per-grid-step overhead; keep >=2 grid steps so
        # both v7x TensorCores get work; cap at 4096 to stay within v7x VMEM.
        batch_tile = max(128, min(4096, _round_up(-(-B // 2), 128)))
    if bf16_epilogue is None:
        bf16_epilogue = _default_bf16_epilogue()
    epilogue_dtype = jnp.bfloat16 if bf16_epilogue else jnp.float32

    num_tiles = pl.cdiv(B, batch_tile)   # Pallas masks the partial tail block.

    weight_spec = pl.BlockSpec(memory_space=pltpu.MemorySpace.VMEM)
    in_specs = [pl.BlockSpec((batch_tile, D), lambda i: (i, 0))]
    in_specs += [weight_spec] * len(packed_params)

    out2d = pl.pallas_call(
        functools.partial(_mlp_kernel, epilogue_dtype=epilogue_dtype),
        out_shape=jax.ShapeDtypeStruct((1, B), jnp.float32),
        grid_spec=pltpu.PrefetchScalarGridSpec(
            num_scalar_prefetch=0,
            grid=(num_tiles,),
            in_specs=in_specs,
            out_specs=pl.BlockSpec((1, batch_tile), lambda i: (0, i)),
        ),
        compiler_params=pltpu.CompilerParams(
            dimension_semantics=("parallel",),
            # Raise the scoped-VMEM limit for large tiles; 48 MiB is safe on
            # v5e/v6e (128 MiB physical) and v7x (64 MiB physical).
            vmem_limit_bytes=48 << 20,
        ),
    )(x, *packed_params)

    return out2d.T   # (B, 1)


def reference_forward(x, params):
    h = x
    for i, (w, b) in enumerate(params):
        h = h @ w + b
        if i < len(params) - 1:
            h = jnp.maximum(h, 0.0)
    return h


if __name__ == "__main__":
    key = jax.random.PRNGKey(0)
    k_x, k_p = jax.random.split(key)

    input_dim = 32
    batch = 200   # not a multiple of the tile -> exercises the partial tail block

    x = jax.random.normal(k_x, (batch, input_dim), jnp.float32)
    params = init_params(k_p, input_dim)
    packed = pack_params(params)

    # Small correctness run: adaptive tile gives 128 here (2 grid steps);
    # production-sized batches get 1024-4096 tiles from the same default.
    out = my_model_forward(x, packed)
    out = jax.block_until_ready(out)

    ref = reference_forward(x, params)
    assert out.shape == (batch, 1), out.shape
    # bf16 MXU operands (+ bf16 epilogue on v6e/v7x) with f32 accumulation:
    # loosened tolerance vs the all-f32 reference.
    max_err = float(jnp.max(jnp.abs(out - ref)))
    assert max_err < 3e-2, max_err

    print("KERNEL_OK")
</pallas_src>

<mosaic_0001>
module attributes {stable_mosaic.version = 11 : i64} {
  func.func @_mlp_kernel(%arg0: i32, %arg1: memref<128x32xf32, #tpu.memory_space<vmem>>, %arg2: memref<512x32xbf16, #tpu.memory_space<vmem>>, %arg3: memref<512x1xf32, #tpu.memory_space<vmem>>, %arg4: memref<256x512xbf16, #tpu.memory_space<vmem>>, %arg5: memref<256x1xf32, #tpu.memory_space<vmem>>, %arg6: memref<128x256xbf16, #tpu.memory_space<vmem>>, %arg7: memref<128x1xf32, #tpu.memory_space<vmem>>, %arg8: memref<64x128xbf16, #tpu.memory_space<vmem>>, %arg9: memref<64x1xf32, #tpu.memory_space<vmem>>, %arg10: memref<32x64xbf16, #tpu.memory_space<vmem>>, %arg11: memref<32x1xf32, #tpu.memory_space<vmem>>, %arg12: memref<16x32xbf16, #tpu.memory_space<vmem>>, %arg13: memref<16x1xf32, #tpu.memory_space<vmem>>, %arg14: memref<16x1xf32, #tpu.memory_space<vmem>>, %arg15: memref<1x1xf32, #tpu.memory_space<vmem>>, %arg16: memref<1x128xf32, #tpu.memory_space<vmem>>) attributes {dimension_semantics = [#tpu.dimension_semantics<parallel>], iteration_bounds = array<i64: 2>, scalar_prefetch = 0 : i64, scratch_operands = 0 : i64, tpu.core_type = #tpu.core_type<tc>, window_params = [{transform_indices = @transform_0, window_bounds = array<i64: 128, 32>}, {pipeline_mode = #tpu.pipeline_mode<synchronous>, transform_indices = @transform_1, window_bounds = array<i64: 512, 32>}, {pipeline_mode = #tpu.pipeline_mode<synchronous>, transform_indices = @transform_2, window_bounds = array<i64: 512, 1>}, {pipeline_mode = #tpu.pipeline_mode<synchronous>, transform_indices = @transform_3, window_bounds = array<i64: 256, 512>}, {pipeline_mode = #tpu.pipeline_mode<synchronous>, transform_indices = @transform_4, window_bounds = array<i64: 256, 1>}, {pipeline_mode = #tpu.pipeline_mode<synchronous>, transform_indices = @transform_5, window_bounds = array<i64: 128, 256>}, {pipeline_mode = #tpu.pipeline_mode<synchronous>, transform_indices = @transform_6, window_bounds = array<i64: 128, 1>}, {pipeline_mode = #tpu.pipeline_mode<synchronous>, transform_indices = @transform_7, window_bounds = array<i64: 64, 128>}, {pipeline_mode = #tpu.pipeline_mode<synchronous>, transform_indices = @transform_8, window_bounds = array<i64: 64, 1>}, {pipeline_mode = #tpu.pipeline_mode<synchronous>, transform_indices = @transform_9, window_bounds = array<i64: 32, 64>}, {pipeline_mode = #tpu.pipeline_mode<synchronous>, transform_indices = @transform_10, window_bounds = array<i64: 32, 1>}, {pipeline_mode = #tpu.pipeline_mode<synchronous>, transform_indices = @transform_11, window_bounds = array<i64: 16, 32>}, {pipeline_mode = #tpu.pipeline_mode<synchronous>, transform_indices = @transform_12, window_bounds = array<i64: 16, 1>}, {pipeline_mode = #tpu.pipeline_mode<synchronous>, transform_indices = @transform_13, window_bounds = array<i64: 16, 1>}, {pipeline_mode = #tpu.pipeline_mode<synchronous>, transform_indices = @transform_14, window_bounds = array<i64: 1, 1>}, {transform_indices = @transform_15, window_bounds = array<i64: 1, 128>}]} {
    %c0 = arith.constant 0 : index
    %c0_0 = arith.constant 0 : index
    %0 = vector.load %arg1[%c0, %c0_0] : memref<128x32xf32, #tpu.memory_space<vmem>>, vector<128x32xf32>
    %1 = arith.truncf %0 : vector<128x32xf32> to vector<128x32xbf16>
    %c0_1 = arith.constant 0 : index
    %c0_2 = arith.constant 0 : index
    %2 = vector.load %arg2[%c0_1, %c0_2] : memref<512x32xbf16, #tpu.memory_space<vmem>>, vector<512x32xbf16>
    %cst = arith.constant dense<0.000000e+00> : vector<512x128xf32>
    %3 = tpu.matmul %2, %1, %cst {dimension_numbers = #tpu.dot_dimension_numbers<[1], [1], [0], [0], [0, 0, 1, 0], [], []>} : vector<512x32xbf16>, vector<128x32xbf16>, vector<512x128xf32> -> vector<512x128xf32>
    %c0_3 = arith.constant 0 : index
    %c0_4 = arith.constant 0 : index
    %4 = vector.load %arg3[%c0_3, %c0_4] : memref<512x1xf32, #tpu.memory_space<vmem>>, vector<512x1xf32>
    %5 = vector.broadcast %4 : vector<512x1xf32> to vector<512x128xf32>
    %6 = arith.addf %3, %5 : vector<512x128xf32>
    %cst_5 = arith.constant 0.000000e+00 : f32
    %7 = vector.broadcast %cst_5 : f32 to vector<512x128xf32>
    %8 = arith.maximumf %6, %7 : vector<512x128xf32>
    %9 = arith.truncf %8 : vector<512x128xf32> to vector<512x128xbf16>
    %c0_6 = arith.constant 0 : index
    %c0_7 = arith.constant 0 : index
    %10 = vector.load %arg4[%c0_6, %c0_7] : memref<256x512xbf16, #tpu.memory_space<vmem>>, vector<256x512xbf16>
    %cst_8 = arith.constant dense<0.000000e+00> : vector<256x128xf32>
    %11 = tpu.matmul %10, %9, %cst_8 {dimension_numbers = #tpu.dot_dimension_numbers<[1], [0], [0], [1], [0, 0, 1, 1], [], []>} : vector<256x512xbf16>, vector<512x128xbf16>, vector<256x128xf32> -> vector<256x128xf32>
    %c0_9 = arith.constant 0 : index
    %c0_10 = arith.constant 0 : index
    %12 = vector.load %arg5[%c0_9, %c0_10] : memref<256x1xf32, #tpu.memory_space<vmem>>, vector<256x1xf32>
    %13 = vector.broadcast %12 : vector<256x1xf32> to vector<256x128xf32>
    %14 = arith.addf %11, %13 : vector<256x128xf32>
    %cst_11 = arith.constant 0.000000e+00 : f32
    %15 = vector.broadcast %cst_11 : f32 to vector<256x128xf32>
    %16 = arith.maximumf %14, %15 : vector<256x128xf32>
    %17 = arith.truncf %16 : vector<256x128xf32> to vector<256x128xbf16>
    %c0_12 = arith.constant 0 : index
    %c0_13 = arith.constant 0 : index
    %18 = vector.load %arg6[%c0_12, %c0_13] : memref<128x256xbf16, #tpu.memory_space<vmem>>, vector<128x256xbf16>
    %cst_14 = arith.constant dense<0.000000e+00> : vector<128x128xf32>
    %19 = tpu.matmul %18, %17, %cst_14 {dimension_numbers = #tpu.dot_dimension_numbers<[1], [0], [0], [1], [0, 0, 1, 1], [], []>} : vector<128x256xbf16>, vector<256x128xbf16>, vector<128x128xf32> -> vector<128x128xf32>
    %c0_15 = arith.constant 0 : index
    %c0_16 = arith.constant 0 : index
    %20 = vector.load %arg7[%c0_15, %c0_16] : memref<128x1xf32, #tpu.memory_space<vmem>>, vector<128x1xf32>
    %21 = vector.broadcast %20 : vector<128x1xf32> to vector<128x128xf32>
    %22 = arith.addf %19, %21 : vector<128x128xf32>
    %cst_17 = arith.constant 0.000000e+00 : f32
    %23 = vector.broadcast %cst_17 : f32 to vector<128x128xf32>
    %24 = arith.maximumf %22, %23 : vector<128x128xf32>
    %25 = arith.truncf %24 : vector<128x128xf32> to vector<128x128xbf16>
    %c0_18 = arith.constant 0 : index
    %c0_19 = arith.constant 0 : index
    %26 = vector.load %arg8[%c0_18, %c0_19] : memref<64x128xbf16, #tpu.memory_space<vmem>>, vector<64x128xbf16>
    %cst_20 = arith.constant dense<0.000000e+00> : vector<64x128xf32>
    %27 = tpu.matmul %26, %25, %cst_20 {dimension_numbers = #tpu.dot_dimension_numbers<[1], [0], [0], [1], [0, 0, 1, 1], [], []>} : vector<64x128xbf16>, vector<128x128xbf16>, vector<64x128xf32> -> vector<64x128xf32>
    %c0_21 = arith.constant 0 : index
    %c0_22 = arith.constant 0 : index
    %28 = vector.load %arg9[%c0_21, %c0_22] : memref<64x1xf32, #tpu.memory_space<vmem>>, vector<64x1xf32>
    %29 = vector.broadcast %28 : vector<64x1xf32> to vector<64x128xf32>
    %30 = arith.addf %27, %29 : vector<64x128xf32>
    %cst_23 = arith.constant 0.000000e+00 : f32
    %31 = vector.broadcast %cst_23 : f32 to vector<64x128xf32>
    %32 = arith.maximumf %30, %31 : vector<64x128xf32>
    %33 = arith.truncf %32 : vector<64x128xf32> to vector<64x128xbf16>
    %c0_24 = arith.constant 0 : index
    %c0_25 = arith.constant 0 : index
    %34 = vector.load %arg10[%c0_24, %c0_25] : memref<32x64xbf16, #tpu.memory_space<vmem>>, vector<32x64xbf16>
    %cst_26 = arith.constant dense<0.000000e+00> : vector<32x128xf32>
    %35 = tpu.matmul %34, %33, %cst_26 {dimension_numbers = #tpu.dot_dimension_numbers<[1], [0], [0], [1], [0, 0, 1, 1], [], []>} : vector<32x64xbf16>, vector<64x128xbf16>, vector<32x128xf32> -> vector<32x128xf32>
    %c0_27 = arith.constant 0 : index
    %c0_28 = arith.constant 0 : index
    %36 = vector.load %arg11[%c0_27, %c0_28] : memref<32x1xf32, #tpu.memory_space<vmem>>, vector<32x1xf32>
    %37 = vector.broadcast %36 : vector<32x1xf32> to vector<32x128xf32>
    %38 = arith.addf %35, %37 : vector<32x128xf32>
    %cst_29 = arith.constant 0.000000e+00 : f32
    %39 = vector.broadcast %cst_29 : f32 to vector<32x128xf32>
    %40 = arith.maximumf %38, %39 : vector<32x128xf32>
    %41 = arith.truncf %40 : vector<32x128xf32> to vector<32x128xbf16>
    %c0_30 = arith.constant 0 : index
    %c0_31 = arith.constant 0 : index
    %42 = vector.load %arg12[%c0_30, %c0_31] : memref<16x32xbf16, #tpu.memory_space<vmem>>, vector<16x32xbf16>
    %cst_32 = arith.constant dense<0.000000e+00> : vector<16x128xf32>
    %43 = tpu.matmul %42, %41, %cst_32 {dimension_numbers = #tpu.dot_dimension_numbers<[1], [0], [0], [1], [0, 0, 1, 1], [], []>} : vector<16x32xbf16>, vector<32x128xbf16>, vector<16x128xf32> -> vector<16x128xf32>
    %c0_33 = arith.constant 0 : index
    %c0_34 = arith.constant 0 : index
    %44 = vector.load %arg13[%c0_33, %c0_34] : memref<16x1xf32, #tpu.memory_space<vmem>>, vector<16x1xf32>
    %45 = vector.broadcast %44 : vector<16x1xf32> to vector<16x128xf32>
    %46 = arith.addf %43, %45 : vector<16x128xf32>
    %cst_35 = arith.constant 0.000000e+00 : f32
    %47 = vector.broadcast %cst_35 : f32 to vector<16x128xf32>
    %48 = arith.maximumf %46, %47 : vector<16x128xf32>
    %c0_36 = arith.constant 0 : index
    %c0_37 = arith.constant 0 : index
    %49 = vector.load %arg14[%c0_36, %c0_37] : memref<16x1xf32, #tpu.memory_space<vmem>>, vector<16x1xf32>
    %50 = vector.broadcast %49 : vector<16x1xf32> to vector<16x128xf32>
    %51 = arith.mulf %48, %50 : vector<16x128xf32>
    %cst_38 = arith.constant dense<0.000000e+00> : vector<128xf32>
    %52 = vector.multi_reduction <add>, %51, %cst_38 [0] : vector<16x128xf32> to vector<128xf32>
    %53 = vector.shape_cast %52 : vector<128xf32> to vector<1x128xf32>
    %c0_39 = arith.constant 0 : index
    %c0_40 = arith.constant 0 : index
    %54 = vector.load %arg15[%c0_39, %c0_40] : memref<1x1xf32, #tpu.memory_space<vmem>>, vector<1x1xf32>
    %55 = vector.broadcast %54 : vector<1x1xf32> to vector<1x128xf32>
    %56 = arith.addf %53, %55 : vector<1x128xf32>
    %c0_41 = arith.constant 0 : index
    %c0_42 = arith.constant 0 : index
    %57 = vector.load %arg16[%c0_41, %c0_42] : memref<1x128xf32, #tpu.memory_space<vmem>>, vector<1x128xf32>
    tpu.vector_store %arg16[%c0_41, %c0_42], %56 {strides = array<i32>} : memref<1x128xf32, #tpu.memory_space<vmem>>, vector<1x128xf32>,
    return
  }
  func.func @transform_0(%arg0: i32) -> (i32, i32) {
    %c0_i32 = arith.constant 0 : i32
    %c0_i32_0 = arith.constant 0 : i32
    return %arg0, %c0_i32 : i32, i32
  }
  func.func @transform_1(%arg0: i32) -> (i32, i32) {
    %c0_i32 = arith.constant 0 : i32
    %c0_i32_0 = arith.constant 0 : i32
    %c0_i32_1 = arith.constant 0 : i32
    return %c0_i32, %c0_i32_0 : i32, i32
  }
  func.func @transform_2(%arg0: i32) -> (i32, i32) {
    %c0_i32 = arith.constant 0 : i32
    %c0_i32_0 = arith.constant 0 : i32
    %c0_i32_1 = arith.constant 0 : i32
    return %c0_i32, %c0_i32_0 : i32, i32
  }
  func.func @transform_3(%arg0: i32) -> (i32, i32) {
    %c0_i32 = arith.constant 0 : i32
    %c0_i32_0 = arith.constant 0 : i32
    %c0_i32_1 = arith.constant 0 : i32
    return %c0_i32, %c0_i32_0 : i32, i32
  }
  func.func @transform_4(%arg0: i32) -> (i32, i32) {
    %c0_i32 = arith.constant 0 : i32
    %c0_i32_0 = arith.constant 0 : i32
    %c0_i32_1 = arith.constant 0 : i32
    return %c0_i32, %c0_i32_0 : i32, i32
  }
  func.func @transform_5(%arg0: i32) -> (i32, i32) {
    %c0_i32 = arith.constant 0 : i32
    %c0_i32_0 = arith.constant 0 : i32
    %c0_i32_1 = arith.constant 0 : i32
    return %c0_i32, %c0_i32_0 : i32, i32
  }
  func.func @transform_6(%arg0: i32) -> (i32, i32) {
    %c0_i32 = arith.constant 0 : i32
    %c0_i32_0 = arith.constant 0 : i32
    %c0_i32_1 = arith.constant 0 : i32
    return %c0_i32, %c0_i32_0 : i32, i32
  }
  func.func @transform_7(%arg0: i32) -> (i32, i32) {
    %c0_i32 = arith.constant 0 : i32
    %c0_i32_0 = arith.constant 0 : i32
    %c0_i32_1 = arith.constant 0 : i32
    return %c0_i32, %c0_i32_0 : i32, i32
  }
  func.func @transform_8(%arg0: i32) -> (i32, i32) {
    %c0_i32 = arith.constant 0 : i32
    %c0_i32_0 = arith.constant 0 : i32
    %c0_i32_1 = arith.constant 0 : i32
    return %c0_i32, %c0_i32_0 : i32, i32
  }
  func.func @transform_9(%arg0: i32) -> (i32, i32) {
    %c0_i32 = arith.constant 0 : i32
    %c0_i32_0 = arith.constant 0 : i32
    %c0_i32_1 = arith.constant 0 : i32
    return %c0_i32, %c0_i32_0 : i32, i32
  }
  func.func @transform_10(%arg0: i32) -> (i32, i32) {
    %c0_i32 = arith.constant 0 : i32
    %c0_i32_0 = arith.constant 0 : i32
    %c0_i32_1 = arith.constant 0 : i32
    return %c0_i32, %c0_i32_0 : i32, i32
  }
  func.func @transform_11(%arg0: i32) -> (i32, i32) {
    %c0_i32 = arith.constant 0 : i32
    %c0_i32_0 = arith.constant 0 : i32
    %c0_i32_1 = arith.constant 0 : i32
    return %c0_i32, %c0_i32_0 : i32, i32
  }
  func.func @transform_12(%arg0: i32) -> (i32, i32) {
    %c0_i32 = arith.constant 0 : i32
    %c0_i32_0 = arith.constant 0 : i32
    %c0_i32_1 = arith.constant 0 : i32
    return %c0_i32, %c0_i32_0 : i32, i32
  }
  func.func @transform_13(%arg0: i32) -> (i32, i32) {
    %c0_i32 = arith.constant 0 : i32
    %c0_i32_0 = arith.constant 0 : i32
    %c0_i32_1 = arith.constant 0 : i32
    return %c0_i32, %c0_i32_0 : i32, i32
  }
  func.func @transform_14(%arg0: i32) -> (i32, i32) {
    %c0_i32 = arith.constant 0 : i32
    %c0_i32_0 = arith.constant 0 : i32
    %c0_i32_1 = arith.constant 0 : i32
    return %c0_i32, %c0_i32_0 : i32, i32
  }
  func.func @transform_15(%arg0: i32) -> (i32, i32) {
    %c0_i32 = arith.constant 0 : i32
    %c0_i32_0 = arith.constant 0 : i32
    return %c0_i32, %arg0 : i32, i32
  }
}

</mosaic_0001>

<llo_original>
// kernel: my_model_forward.1
$region0: #{my_model_forward.1}
  #allocation0 [shape = 'u32[]', space=smem, size = 0x4, offset = 0x4, fixed_abs, tag = 'smem constant byte address 0x4 - core index']
  #allocation1 [shape = 'u32[144,128]{1,0:T(1,128)}', space=vmem, size = 0x12000, scoped, tag = 'internal scratch']
  #allocation2 [shape = 'f32[1,1]{1,0:T(1,128)S(1)}', space=vmem, size = 0x200, scoped, tag = 'scoped memory for my_model_forward.1']
  %s0 = inlined_call_operand.vmem [shape: f32[200,32], index: 0, kind: input, shape index: {}]
  %s1 = inlined_call_operand.vmem [shape: bf16[512,32], index: 1, kind: input, shape index: {}]
  %s2 = inlined_call_operand.vmem [shape: f32[512,1], index: 2, kind: input, shape index: {}]
  %s3 = inlined_call_operand.vmem [shape: bf16[256,512], index: 3, kind: input, shape index: {}]
  %s4 = inlined_call_operand.vmem [shape: f32[256,1], index: 4, kind: input, shape index: {}]
  %s5 = inlined_call_operand.vmem [shape: bf16[128,256], index: 5, kind: input, shape index: {}]
  %s6 = inlined_call_operand.vmem [shape: f32[128,1], index: 6, kind: input, shape index: {}]
  %s7 = inlined_call_operand.vmem [shape: bf16[64,128], index: 7, kind: input, shape index: {}]
  %s8 = inlined_call_operand.vmem [shape: f32[64,1], index: 8, kind: input, shape index: {}]
  %s9 = inlined_call_operand.vmem [shape: bf16[32,64], index: 9, kind: input, shape index: {}]
  %s10 = inlined_call_operand.vmem [shape: f32[32,1], index: 10, kind: input, shape index: {}]
  %s11 = inlined_call_operand.vmem [shape: bf16[16,32], index: 11, kind: input, shape index: {}]
  %s12 = inlined_call_operand.vmem [shape: f32[16,1], index: 12, kind: input, shape index: {}]
  %s13 = inlined_call_operand.vmem [shape: f32[16,1], index: 13, kind: input, shape index: {}]
  %s14 = inlined_call_operand.<no memory space> [shape: f32[1,1], index: 14, kind: input, shape index: {}]
  %s15 = inlined_call_operand.hbm [shape: f32[1,200], index: 15, kind: output, shape index: {}]
  %s16 = sld [smem:[#allocation0]]
  $region93: #{my_model_forward.1} parent=0
    _
  %s18 = ssub.s32 1, %s16
  %s19 = scalar_select 0, %s18, %s16
  %v20 = vstv %s14
  %21 = vst [vmem:[#allocation2] sm:$0x1] %v20
  $region1: #{my_model_forward.1} parent=0
    #allocation3 [shape = 'u8[1024]{0}', space=vmem, size = 0x400, scoped, tag = 'output window, operand 0']
    #allocation4 [shape = 's32[2]{0}', space=sflag, size = 0x8, scoped, tag = 'scoped memory for my_model_forward.1']
    %22 = vsyncpa [#allocation4], 0
    %s23 = scalar_lea.sflag [#allocation4], 1
    %24 = vsyncpa %s23, 0
    loop: start=0, step=1, limit=4
    $region2: #{my_model_forward.1} parent=1 // loop_pre_header
      _
    $region3: #{my_model_forward.1} parent=1 // loop_header
      %s26 = sphi 0, %s30
      %p27 = scmp.ge.s32.totalorder %s26, 4
      %s36 = sphi 0, %s38
      %s39 = sphi 0, %s36
      %s40 = sphi 0, %s39
      %s56 = sphi 0, %s40
      %s60 = sphi 0, %s60
      %s62 = sphi 0, %s60
      %s63 = sphi 0, %s62
      %s77 = sphi 0, %s63
      %s81 = sphi 0, %s81
      %s83 = sphi 0, %s81
      %s84 = sphi 0, %s83
      %s98 = sphi 0, %s84
      %s102 = sphi 0, %s102
      %s104 = sphi 0, %s102
      %s105 = sphi 0, %s104
      %s119 = sphi 0, %s105
      %s123 = sphi 0, %s123
      %s125 = sphi 0, %s123
      %s126 = sphi 0, %s125
      %s140 = sphi 0, %s126
      %s144 = sphi 0, %s144
      %s146 = sphi 0, %s144
      %s147 = sphi 0, %s146
      %s161 = sphi 0, %s147
      %s165 = sphi 0, %s165
      %s167 = sphi 0, %s165
      %s168 = sphi 0, %s167
      %s182 = sphi 0, %s168
      %s186 = sphi 0, %s186
      %s188 = sphi 0, %s186
      %s189 = sphi 0, %s188
      %s203 = sphi 0, %s189
      %s207 = sphi 0, %s207
      %s209 = sphi 0, %s207
      %s210 = sphi 0, %s209
      %s224 = sphi 0, %s210
      %s228 = sphi 0, %s228
      %s230 = sphi 0, %s228
      %s231 = sphi 0, %s230
      %s245 = sphi 0, %s231
      %s249 = sphi 0, %s249
      %s251 = sphi 0, %s249
      %s252 = sphi 0, %s251
      %s266 = sphi 0, %s252
      %s270 = sphi 0, %s270
      %s272 = sphi 0, %s270
      %s273 = sphi 0, %s272
      %s287 = sphi 0, %s273
      %s291 = sphi 0, %s291
      %s293 = sphi 0, %s291
      %s294 = sphi 0, %s293
      %s308 = sphi 0, %s294
      %s312 = sphi 0, %s312
      %s314 = sphi 0, %s312
      %s315 = sphi 0, %s314
      %s329 = sphi 0, %s315
      %s333 = sphi 0, %s333
      %s335 = sphi 0, %s333
      %s336 = sphi 0, %s335
      %s350 = sphi 0, %s336
      %s356 = sphi 0, %s358
      %s359 = sphi 0, %s356
      %s360 = sphi 0, %s359
      %s376 = sphi 0, %s360
    $region4: #{my_model_forward.1} parent=1 // loop_header_branch
      %29 = sbr.rel (%p27) target = $region8
    $region5: #{my_model_forward.1} parent=1 // loop_body
      %s31 = ssub.s32 %s26, 1
      %s32 = ssub.s32 %s26, 2
      %s33 = sadd.s32 %s26, 1
      %s34 = ssub.s32 %s26, %s33
      %p35 = scmp.eq.s32.totalorder %s34, 0
      %s37 = sadd.s32 %s36, 1
      %s38 = scalar_select %p35, %s36, %s37
      %p41 = pneg %p35
      %p42 = scmp.eq.s32.totalorder %s26, 1
      %p43 = por %p41, %p42
      %p44 = scmp.ne.s32.totalorder %s36, %s39
      %p45 = scmp.eq.s32.totalorder %s26, 0
      %p46 = por %p44, %p45
      %p47 = scmp.ne.s32.totalorder %s36, %s39
      %p48 = scmp.eq.s32.totalorder %s31, 1
      %p49 = por %p47, %p48
      %p50 = scmp.ne.s32.totalorder %s39, %s40
      %p51 = scmp.eq.s32.totalorder %s31, 0
      %p52 = por %p50, %p51
      %p53 = scmp.ne.s32.totalorder %s39, %s40
      %p54 = scmp.eq.s32.totalorder %s32, 1
      %p55 = por %p53, %p54
      %p57 = scmp.ne.s32.totalorder %s40, %s56
      %p58 = scmp.eq.s32.totalorder %s32, 0
      %p59 = por %p57, %p58
      %s61 = sadd.s32 %s60, 1
      %p64 = scmp.eq.s32.totalorder %s26, 1
      %p65 = scmp.ne.s32.totalorder %s60, %s62
      %p66 = scmp.eq.s32.totalorder %s26, 0
      %p67 = por %p65, %p66
      %p68 = scmp.ne.s32.totalorder %s60, %s62
      %p69 = scmp.eq.s32.totalorder %s31, 1
      %p70 = por %p68, %p69
      %p71 = scmp.ne.s32.totalorder %s62, %s63
      %p72 = scmp.eq.s32.totalorder %s31, 0
      %p73 = por %p71, %p72
      %p74 = scmp.ne.s32.totalorder %s62, %s63
      %p75 = scmp.eq.s32.totalorder %s32, 1
      %p76 = por %p74, %p75
      %p78 = scmp.ne.s32.totalorder %s63, %s77
      %p79 = scmp.eq.s32.totalorder %s32, 0
      %p80 = por %p78, %p79
      %s82 = sadd.s32 %s81, 1
      %p85 = scmp.eq.s32.totalorder %s26, 1
      %p86 = scmp.ne.s32.totalorder %s81, %s83
      %p87 = scmp.eq.s32.totalorder %s26, 0
      %p88 = por %p86, %p87
      %p89 = scmp.ne.s32.totalorder %s81, %s83
      %p90 = scmp.eq.s32.totalorder %s31, 1
      %p91 = por %p89, %p90
      %p92 = scmp.ne.s32.totalorder %s83, %s84
      %p93 = scmp.eq.s32.totalorder %s31, 0
      %p94 = por %p92, %p93
      %p95 = scmp.ne.s32.totalorder %s83, %s84
      %p96 = scmp.eq.s32.totalorder %s32, 1
      %p97 = por %p95, %p96
      %p99 = scmp.ne.s32.totalorder %s84, %s98
      %p100 = scmp.eq.s32.totalorder %s32, 0
      %p101 = por %p99, %p100
      %s103 = sadd.s32 %s102, 1
      %p106 = scmp.eq.s32.totalorder %s26, 1
      %p107 = scmp.ne.s32.totalorder %s102, %s104
      %p108 = scmp.eq.s32.totalorder %s26, 0
      %p109 = por %p107, %p108
      %p110 = scmp.ne.s32.totalorder %s102, %s104
      %p111 = scmp.eq.s32.totalorder %s31, 1
      %p112 = por %p110, %p111
      %p113 = scmp.ne.s32.totalorder %s104, %s105
      %p114 = scmp.eq.s32.totalorder %s31, 0
      %p115 = por %p113, %p114
      %p116 = scmp.ne.s32.totalorder %s104, %s105
      %p117 = scmp.eq.s32.totalorder %s32, 1
      %p118 = por %p116, %p117
      %p120 = scmp.ne.s32.totalorder %s105, %s119
      %p121 = scmp.eq.s32.totalorder %s32, 0
      %p122 = por %p120, %p121
      %s124 = sadd.s32 %s123, 1
      %p127 = scmp.eq.s32.totalorder %s26, 1
      %p128 = scmp.ne.s32.totalorder %s123, %s125
      %p129 = scmp.eq.s32.totalorder %s26, 0
      %p130 = por %p128, %p129
      %p131 = scmp.ne.s32.totalorder %s123, %s125
      %p132 = scmp.eq.s32.totalorder %s31, 1
      %p133 = por %p131, %p132
      %p134 = scmp.ne.s32.totalorder %s125, %s126
      %p135 = scmp.eq.s32.totalorder %s31, 0
      %p136 = por %p134, %p135
      %p137 = scmp.ne.s32.totalorder %s125, %s126
      %p138 = scmp.eq.s32.totalorder %s32, 1
      %p139 = por %p137, %p138
      %p141 = scmp.ne.s32.totalorder %s126, %s140
      %p142 = scmp.eq.s32.totalorder %s32, 0
      %p143 = por %p141, %p142
      %s145 = sadd.s32 %s144, 1
      %p148 = scmp.eq.s32.totalorder %s26, 1
      %p149 = scmp.ne.s32.totalorder %s144, %s146
      %p150 = scmp.eq.s32.totalorder %s26, 0
      %p151 = por %p149, %p150
      %p152 = scmp.ne.s32.totalorder %s144, %s146
      %p153 = scmp.eq.s32.totalorder %s31, 1
      %p154 = por %p152, %p153
      %p155 = scmp.ne.s32.totalorder %s146, %s147
      %p156 = scmp.eq.s32.totalorder %s31, 0
      %p157 = por %p155, %p156
      %p158 = scmp.ne.s32.totalorder %s146, %s147
      %p159 = scmp.eq.s32.totalorder %s32, 1
      %p160 = por %p158, %p159
      %p162 = scmp.ne.s32.totalorder %s147, %s161
      %p163 = scmp.eq.s32.totalorder %s32, 0
      %p164 = por %p162, %p163
      %s166 = sadd.s32 %s165, 1
      %p169 = scmp.eq.s32.totalorder %s26, 1
      %p170 = scmp.ne.s32.totalorder %s165, %s167
      %p171 = scmp.eq.s32.totalorder %s26, 0
      %p172 = por %p170, %p171
      %p173 = scmp.ne.s32.totalorder %s165, %s167
      %p174 = scmp.eq.s32.totalorder %s31, 1
      %p175 = por %p173, %p174
      %p176 = scmp.ne.s32.totalorder %s167, %s168
      %p177 = scmp.eq.s32.totalorder %s31, 0
      %p178 = por %p176, %p177
      %p179 = scmp.ne.s32.totalorder %s167, %s168
      %p180 = scmp.eq.s32.totalorder %s32, 1
      %p181 = por %p179, %p180
      %p183 = scmp.ne.s32.totalorder %s168, %s182
      %p184 = scmp.eq.s32.totalorder %s32, 0
      %p185 = por %p183, %p184
      %s187 = sadd.s32 %s186, 1
      %p190 = scmp.eq.s32.totalorder %s26, 1
      %p191 = scmp.ne.s32.totalorder %s186, %s188
      %p192 = scmp.eq.s32.totalorder %s26, 0
      %p193 = por %p191, %p192
      %p194 = scmp.ne.s32.totalorder %s186, %s188
      %p195 = scmp.eq.s32.totalorder %s31, 1
      %p196 = por %p194, %p195
      %p197 = scmp.ne.s32.totalorder %s188, %s189
      %p198 = scmp.eq.s32.totalorder %s31, 0
      %p199 = por %p197, %p198
      %p200 = scmp.ne.s32.totalorder %s188, %s189
      %p201 = scmp.eq.s32.totalorder %s32, 1
      %p202 = por %p200, %p201
      %p204 = scmp.ne.s32.totalorder %s189, %s203
      %p205 = scmp.eq.s32.totalorder %s32, 0
      %p206 = por %p204, %p205
      %s208 = sadd.s32 %s207, 1
      %p211 = scmp.eq.s32.totalorder %s26, 1
      %p212 = scmp.ne.s32.totalorder %s207, %s209
      %p213 = scmp.eq.s32.totalorder %s26, 0
      %p214 = por %p212, %p213
      %p215 = scmp.ne.s32.totalorder %s207, %s209
      %p216 = scmp.eq.s32.totalorder %s31, 1
      %p217 = por %p215, %p216
      %p218 = scmp.ne.s32.totalorder %s209, %s210
      %p219 = scmp.eq.s32.totalorder %s31, 0
      %p220 = por %p218, %p219
      %p221 = scmp.ne.s32.totalorder %s209, %s210
      %p222 = scmp.eq.s32.totalorder %s32, 1
      %p223 = por %p221, %p222
      %p225 = scmp.ne.s32.totalorder %s210, %s224
      %p226 = scmp.eq.s32.totalorder %s32, 0
      %p227 = por %p225, %p226
      %s229 = sadd.s32 %s228, 1
      %p232 = scmp.eq.s32.totalorder %s26, 1
      %p233 = scmp.ne.s32.totalorder %s228, %s230
      %p234 = scmp.eq.s32.totalorder %s26, 0
      %p235 = por %p233, %p234
      %p236 = scmp.ne.s32.totalorder %s228, %s230
      %p237 = scmp.eq.s32.totalorder %s31, 1
      %p238 = por %p236, %p237
      %p239 = scmp.ne.s32.totalorder %s230, %s231
      %p240 = scmp.eq.s32.totalorder %s31, 0
      %p241 = por %p239, %p240
      %p242 = scmp.ne.s32.totalorder %s230, %s231
      %p243 = scmp.eq.s32.totalorder %s32, 1
      %p244 = por %p242, %p243
      %p246 = scmp.ne.s32.totalorder %s231, %s245
      %p247 = scmp.eq.s32.totalorder %s32, 0
      %p248 = por %p246, %p247
      %s250 = sadd.s32 %s249, 1
      %p253 = scmp.eq.s32.totalorder %s26, 1
      %p254 = scmp.ne.s32.totalorder %s249, %s251
      %p255 = scmp.eq.s32.totalorder %s26, 0
      %p256 = por %p254, %p255
      %p257 = scmp.ne.s32.totalorder %s249, %s251
      %p258 = scmp.eq.s32.totalorder %s31, 1
      %p259 = por %p257, %p258
      %p260 = scmp.ne.s32.totalorder %s251, %s252
      %p261 = scmp.eq.s32.totalorder %s31, 0
      %p262 = por %p260, %p261
      %p263 = scmp.ne.s32.totalorder %s251, %s252
      %p264 = scmp.eq.s32.totalorder %s32, 1
      %p265 = por %p263, %p264
      %p267 = scmp.ne.s32.totalorder %s252, %s266
      %p268 = scmp.eq.s32.totalorder %s32, 0
      %p269 = por %p267, %p268
      %s271 = sadd.s32 %s270, 1
      %p274 = scmp.eq.s32.totalorder %s26, 1
      %p275 = scmp.ne.s32.totalorder %s270, %s272
      %p276 = scmp.eq.s32.totalorder %s26, 0
      %p277 = por %p275, %p276
      %p278 = scmp.ne.s32.totalorder %s270, %s272
      %p279 = scmp.eq.s32.totalorder %s31, 1
      %p280 = por %p278, %p279
      %p281 = scmp.ne.s32.totalorder %s272, %s273
      %p282 = scmp.eq.s32.totalorder %s31, 0
      %p283 = por %p281, %p282
      %p284 = scmp.ne.s32.totalorder %s272, %s273
      %p285 = scmp.eq.s32.totalorder %s32, 1
      %p286 = por %p284, %p285
      %p288 = scmp.ne.s32.totalorder %s273, %s287
      %p289 = scmp.eq.s32.totalorder %s32, 0
      %p290 = por %p288, %p289
      %s292 = sadd.s32 %s291, 1
      %p295 = scmp.eq.s32.totalorder %s26, 1
      %p296 = scmp.ne.s32.totalorder %s291, %s293
      %p297 = scmp.eq.s32.totalorder %s26, 0
      %p298 = por %p296, %p297
      %p299 = scmp.ne.s32.totalorder %s291, %s293
      %p300 = scmp.eq.s32.totalorder %s31, 1
      %p301 = por %p299, %p300
      %p302 = scmp.ne.s32.totalorder %s293, %s294
      %p303 = scmp.eq.s32.totalorder %s31, 0
      %p304 = por %p302, %p303
      %p305 = scmp.ne.s32.totalorder %s293, %s294
      %p306 = scmp.eq.s32.totalorder %s32, 1
      %p307 = por %p305, %p306
      %p309 = scmp.ne.s32.totalorder %s294, %s308
      %p310 = scmp.eq.s32.totalorder %s32, 0
      %p311 = por %p309, %p310
      %s313 = sadd.s32 %s312, 1
      %p316 = scmp.eq.s32.totalorder %s26, 1
      %p317 = scmp.ne.s32.totalorder %s312, %s314
      %p318 = scmp.eq.s32.totalorder %s26, 0
      %p319 = por %p317, %p318
      %p320 = scmp.ne.s32.totalorder %s312, %s314
      %p321 = scmp.eq.s32.totalorder %s31, 1
      %p322 = por %p320, %p321
      %p323 = scmp.ne.s32.totalorder %s314, %s315
      %p324 = scmp.eq.s32.totalorder %s31, 0
      %p325 = por %p323, %p324
      %p326 = scmp.ne.s32.totalorder %s314, %s315
      %p327 = scmp.eq.s32.totalorder %s32, 1
      %p328 = por %p326, %p327
      %p330 = scmp.ne.s32.totalorder %s315, %s329
      %p331 = scmp.eq.s32.totalorder %s32, 0
      %p332 = por %p330, %p331
      %s334 = sadd.s32 %s333, 1
      %p337 = scmp.eq.s32.totalorder %s26, 1
      %p338 = scmp.ne.s32.totalorder %s333, %s335
      %p339 = scmp.eq.s32.totalorder %s26, 0
      %p340 = por %p338, %p339
      %p341 = scmp.ne.s32.totalorder %s333, %s335
      %p342 = scmp.eq.s32.totalorder %s31, 1
      %p343 = por %p341, %p342
      %p344 = scmp.ne.s32.totalorder %s335, %s336
      %p345 = scmp.eq.s32.totalorder %s31, 0
      %p346 = por %p344, %p345
      %p347 = scmp.ne.s32.totalorder %s335, %s336
      %p348 = scmp.eq.s32.totalorder %s32, 1
      %p349 = por %p347, %p348
      %p351 = scmp.ne.s32.totalorder %s336, %s350
      %p352 = scmp.eq.s32.totalorder %s32, 0
      %p353 = por %p351, %p352
      %s354 = ssub.s32 %s26, %s33
      %p355 = scmp.eq.s32.totalorder %s354, 0
      %s357 = sadd.s32 %s356, 1
      %s358 = scalar_select %p355, %s356, %s357
      %p361 = pneg %p355
      %p362 = scmp.eq.s32.totalorder %s26, 1
      %p363 = por %p361, %p362
      %p364 = scmp.ne.s32.totalorder %s356, %s359
      %p365 = scmp.eq.s32.totalorder %s26, 0
      %p366 = por %p364, %p365
      %p367 = scmp.ne.s32.totalorder %s356, %s359
      %p368 = scmp.eq.s32.totalorder %s31, 1
      %p369 = por %p367, %p368
      %p370 = scmp.ne.s32.totalorder %s359, %s360
      %p371 = scmp.eq.s32.totalorder %s31, 0
      %p372 = por %p370, %p371
      %p373 = scmp.ne.s32.totalorder %s359, %s360
      %p374 = scmp.eq.s32.totalorder %s32, 1
      %p375 = por %p373, %p374
      %p377 = scmp.ne.s32.totalorder %s360, %s376
      %p378 = scmp.eq.s32.totalorder %s32, 0
      %p379 = por %p377, %p378
      %p380 = scmp.le.s32.totalorder 1, %s26
      %p381 = scmp.lt.s32.totalorder %s26, 3
      %p382 = pnand %p380, %p381
      %p383 = pneg %p382
      // Predicated region
      $region9: #{my_model_forward.1} parent=5 // pred_check
        _
      $region10: #{my_model_forward.1} parent=5 // pred_check_branch
        %385 = sbr.rel (%p382) target = $region12
      $region11: #{my_model_forward.1} parent=5 // pred_region
        %s386 = ssub.s32 %s26, 1
        // Predicated region
        $region13: #{my_model_forward.1} parent=11 // pred_check
          %p387 = pneg %p73
        $region14: #{my_model_forward.1} parent=11 // pred_check_branch
          %389 = sbr.rel (%p387) target = $region16
        $region15: #{my_model_forward.1} parent=11 // pred_region
          _
        $region16: #{my_model_forward.1} parent=11 // pred_fallthru
          _
        // Predicated region
        $region17: #{my_model_forward.1} parent=11 // pred_check
          %p390 = pneg %p94
        $region18: #{my_model_forward.1} parent=11 // pred_check_branch
          %392 = sbr.rel (%p390) target = $region20
        $region19: #{my_model_forward.1} parent=11 // pred_region
          _
        $region20: #{my_model_forward.1} parent=11 // pred_fallthru
          _
        // Predicated region
        $region21: #{my_model_forward.1} parent=11 // pred_check
          %p393 = pneg %p115
        $region22: #{my_model_forward.1} parent=11 // pred_check_branch
          %395 = sbr.rel (%p393) target = $region24
        $region23: #{my_model_forward.1} parent=11 // pred_region
          _
        $region24: #{my_model_forward.1} parent=11 // pred_fallthru
          _
        // Predicated region
        $region25: #{my_model_forward.1} parent=11 // pred_check
          %p396 = pneg %p136
        $region26: #{my_model_forward.1} parent=11 // pred_check_branch
          %398 = sbr.rel (%p396) target = $region28
        $region27: #{my_model_forward.1} parent=11 // pred_region
          _
        $region28: #{my_model_forward.1} parent=11 // pred_fallthru
          _
        // Predicated region
        $region29: #{my_model_forward.1} parent=11 // pred_check
          %p399 = pneg %p157
        $region30: #{my_model_forward.1} parent=11 // pred_check_branch
          %401 = sbr.rel (%p399) target = $region32
        $region31: #{my_model_forward.1} parent=11 // pred_region
          _
        $region32: #{my_model_forward.1} parent=11 // pred_fallthru
          _
        // Predicated region
        $region33: #{my_model_forward.1} parent=11 // pred_check
          %p402 = pneg %p178
        $region34: #{my_model_forward.1} parent=11 // pred_check_branch
          %404 = sbr.rel (%p402) target = $region36
        $region35: #{my_model_forward.1} parent=11 // pred_region
          _
        $region36: #{my_model_forward.1} parent=11 // pred_fallthru
          _
        // Predicated region
        $region37: #{my_model_forward.1} parent=11 // pred_check
          %p405 = pneg %p199
        $region38: #{my_model_forward.1} parent=11 // pred_check_branch
          %407 = sbr.rel (%p405) target = $region40
        $region39: #{my_model_forward.1} parent=11 // pred_region
          _
        $region40: #{my_model_forward.1} parent=11 // pred_fallthru
          _
        // Predicated region
        $region41: #{my_model_forward.1} parent=11 // pred_check
          %p408 = pneg %p220
        $region42: #{my_model_forward.1} parent=11 // pred_check_branch
          %410 = sbr.rel (%p408) target = $region44
        $region43: #{my_model_forward.1} parent=11 // pred_region
          _
        $region44: #{my_model_forward.1} parent=11 // pred_fallthru
          _
        // Predicated region
        $region45: #{my_model_forward.1} parent=11 // pred_check
          %p411 = pneg %p241
        $region46: #{my_model_forward.1} parent=11 // pred_check_branch
          %413 = sbr.rel (%p411) target = $region48
        $region47: #{my_model_forward.1} parent=11 // pred_region
          _
        $region48: #{my_model_forward.1} parent=11 // pred_fallthru
          _
        // Predicated region
        $region49: #{my_model_forward.1} parent=11 // pred_check
          %p414 = pneg %p262
        $region50: #{my_model_forward.1} parent=11 // pred_check_branch
          %416 = sbr.rel (%p414) target = $region52
        $region51: #{my_model_forward.1} parent=11 // pred_region
          _
        $region52: #{my_model_forward.1} parent=11 // pred_fallthru
          _
        // Predicated region
        $region53: #{my_model_forward.1} parent=11 // pred_check
          %p417 = pneg %p283
        $region54: #{my_model_forward.1} parent=11 // pred_check_branch
          %419 = sbr.rel (%p417) target = $region56
        $region55: #{my_model_forward.1} parent=11 // pred_region
          _
        $region56: #{my_model_forward.1} parent=11 // pred_fallthru
          _
        // Predicated region
        $region57: #{my_model_forward.1} parent=11 // pred_check
          %p420 = pneg %p304
        $region58: #{my_model_forward.1} parent=11 // pred_check_branch
          %422 = sbr.rel (%p420) target = $region60
        $region59: #{my_model_forward.1} parent=11 // pred_region
          _
        $region60: #{my_model_forward.1} parent=11 // pred_fallthru
          _
        // Predicated region
        $region61: #{my_model_forward.1} parent=11 // pred_check
          %p423 = pneg %p325
        $region62: #{my_model_forward.1} parent=11 // pred_check_branch
          %425 = sbr.rel (%p423) target = $region64
        $region63: #{my_model_forward.1} parent=11 // pred_region
          _
        $region64: #{my_model_forward.1} parent=11 // pred_fallthru
          _
        // Predicated region
        $region65: #{my_model_forward.1} parent=11 // pred_check
          %p426 = pneg %p346
        $region66: #{my_model_forward.1} parent=11 // pred_check_branch
          %428 = sbr.rel (%p426) target = $region68
        $region67: #{my_model_forward.1} parent=11 // pred_region
          _
        $region68: #{my_model_forward.1} parent=11 // pred_fallthru
          _
      $region12: #{my_model_forward.1} parent=5 // pred_fallthru
        _
      %p429 = scmp.lt.s32.totalorder %s26, 2
      // Predicated region
      $region69: #{my_model_forward.1} parent=5 // pred_check
        %p430 = pneg %p429
      $region70: #{my_model_forward.1} parent=5 // pred_check_branch
        %432 = sbr.rel (%p430) target = $region72
      $region71: #{my_model_forward.1} parent=5 // pred_region
        // Predicated region
        $region73: #{my_model_forward.1} parent=71 // pred_check
          %p433 = pneg %p46
        $region74: #{my_model_forward.1} parent=71 // pred_check_branch
          %435 = sbr.rel (%p433) target = $region76
        $region75: #{my_model_forward.1} parent=71 // pred_region
          %s436 = smul.u32 16, %s26
          %s437 = ssub.s32 25, %s436
          %p438 = scmp.lt.s32.totalorder %s437, 16
          %s439 = scalar_select %p438, %s437, 16
          %s440 = smul.u32 128, %s439
          %p441 = scmp.lt.s32.totalorder %s436, 24
          %s442 = scalar_select %p441, %s436, 24
          %s443 = smul.addr %s442, 8
          %s444 = scalar_lea.vmem %s0, %s443
          %s445 = smul.u32 16, %s26
          %s446 = ssub.s32 25, %s445
          %p447 = scmp.lt.s32.totalorder %s446, 16
          %s448 = scalar_select %p447, %s446, 16
          %s449 = smul.u32 128, %s448
        $region76: #{my_model_forward.1} parent=71 // pred_fallthru
          _
      $region72: #{my_model_forward.1} parent=5 // pred_fallthru
        _
      %p450 = scmp.le.s32.totalorder 1, %s26
      %p451 = scmp.lt.s32.totalorder %s26, 3
      %p452 = pnand %p450, %p451
      %p453 = pneg %p452
      // Predicated region
      $region77: #{my_model_forward.1} parent=5 // pred_check
        _
      $region78: #{my_model_forward.1} parent=5 // pred_check_branch
        %455 = sbr.rel (%p452) target = $region80
      $region79: #{my_model_forward.1} parent=5 // pred_region
        %s456 = ssub.s32 %s26, 1
        %s457 = smul.u32 16, %s31
        %s458 = ssub.s32 25, %s457
        %p459 = scmp.lt.s32.totalorder %s458, 16
        %s460 = scalar_select %p459, %s458, 16
        %s461 = smul.u32 128, %s460
        %p462 = scmp.lt.s32.totalorder %s457, 24
        %s463 = scalar_select %p462, %s457, 24
        %s464 = smul.addr %s463, 8
        %s465 = scalar_lea.vmem %s0, %s464
        %p466 = pneg %p52
        %p467 = pneg %p49
        %p468 = pneg %p73
        %p469 = pneg %p70
        %p470 = pneg %p94
        %p471 = pneg %p91
        %p472 = pneg %p115
        %p473 = pneg %p112
        %p474 = pneg %p136
        %p475 = pneg %p133
        %p476 = pneg %p157
        %p477 = pneg %p154
        %p478 = pneg %p178
        %p479 = pneg %p175
        %p480 = pneg %p199
        %p481 = pneg %p196
        %p482 = pneg %p220
        %p483 = pneg %p217
        %p484 = pneg %p241
        %p485 = pneg %p238
        %p486 = pneg %p262
        %p487 = pneg %p259
        %p488 = pneg %p283
        %p489 = pneg %p280
        %p490 = pneg %p304
        %p491 = pneg %p301
        %p492 = pneg %p325
        %p493 = pneg %p322
        %p494 = pneg %p346
        %p495 = pneg %p343
        %p496 = pneg %p372
        %p497 = pneg %p369
        %s498 = sand.u32 %s359, 1
        %s499 = scalar_lea.sflag [#allocation4], %s498
        %s500 = sand.u32 %s359, 1
        %s501 = scalar_lea.vmem [#allocation3], %s500
        %s502 = smul.u32 16, %s31
        %s503 = ssub.s32 25, %s502
        %p504 = scmp.lt.s32.totalorder %s503, 16
        %s505 = scalar_select %p504, %s503, 16
        %s506 = smul.u32 128, %s505
        %p507 = scmp.lt.s32.totalorder %s502, 24
        %s508 = scalar_select %p507, %s502, 24
        %s509 = smul.addr %s508, 8
        %s510 = scalar_lea.vmem %s0, %s509
        %s511 = smul.u32 16, %s31
        %s512 = ssub.s32 25, %s511
        %p513 = scmp.lt.s32.totalorder %s512, 16
        %s514 = scalar_select %p513, %s512, 16
        %s515 = smul.u32 128, %s514
        %v517 = vld [vmem:[%s510] sm:$0xff]
        %v518 = vld [vmem:[%s510 + $0x8] sm:$0xff]
        %v519 = vld [vmem:[%s510 + $0x10] sm:$0xff]
        %v520 = vld [vmem:[%s510 + $0x18] sm:$0xff]
        %v521 = vld [vmem:[%s510 + $0x20] sm:$0xff]
        %v522 = vld [vmem:[%s510 + $0x28] sm:$0xff]
        %v523 = vld [vmem:[%s510 + $0x30] sm:$0xff]
        %v524 = vld [vmem:[%s510 + $0x38] sm:$0xff]
        %v525 = vld [vmem:[%s510 + $0x40] sm:$0xff]
        %v526 = vld [vmem:[%s510 + $0x48] sm:$0xff]
        %v527 = vld [vmem:[%s510 + $0x50] sm:$0xff]
        %v528 = vld [vmem:[%s510 + $0x58] sm:$0xff]
        %v529 = vld [vmem:[%s510 + $0x60] sm:$0xff]
        %v530 = vld [vmem:[%s510 + $0x68] sm:$0xff]
        %v531 = vld [vmem:[%s510 + $0x70] sm:$0xff]
        %v532 = vld [vmem:[%s510 + $0x78] sm:$0xff]
        %v533 = vpack.c.bf16 %v518, %v517
        %v534 = vpack.c.bf16 %v520, %v519
        %v535 = vpack.c.bf16 %v522, %v521
        %v536 = vpack.c.bf16 %v524, %v523
        %v537 = vpack.c.bf16 %v526, %v525
        %v538 = vpack.c.bf16 %v528, %v527
        %v539 = vpack.c.bf16 %v530, %v529
        %v540 = vpack.c.bf16 %v532, %v531
        %v541 = vld [vmem:[%s1] sm:$0xf]
        %v542 = vld [vmem:[%s1 + $0x4] sm:$0xf]
        %v543 = vld [vmem:[%s1 + $0x8] sm:$0xf]
        %v544 = vld [vmem:[%s1 + $0xc] sm:$0xf]
        %v545 = vld [vmem:[%s1 + $0x10] sm:$0xf]
        %v546 = vld [vmem:[%s1 + $0x14] sm:$0xf]
        %v547 = vld [vmem:[%s1 + $0x18] sm:$0xf]
        %v548 = vld [vmem:[%s1 + $0x1c] sm:$0xf]
        %v549 = vld [vmem:[%s1 + $0x20] sm:$0xf]
        %v550 = vld [vmem:[%s1 + $0x24] sm:$0xf]
        %v551 = vld [vmem:[%s1 + $0x28] sm:$0xf]
        %v552 = vld [vmem:[%s1 + $0x2c] sm:$0xf]
        %v553 = vld [vmem:[%s1 + $0x30] sm:$0xf]
        %v554 = vld [vmem:[%s1 + $0x34] sm:$0xf]
        %v555 = vld [vmem:[%s1 + $0x38] sm:$0xf]
        %v556 = vld [vmem:[%s1 + $0x3c] sm:$0xf]
        %v557 = vld [vmem:[%s1 + $0x40] sm:$0xf]
        %v558 = vld [vmem:[%s1 + $0x44] sm:$0xf]
        %v559 = vld [vmem:[%s1 + $0x48] sm:$0xf]
        %v560 = vld [vmem:[%s1 + $0x4c] sm:$0xf]
        %v561 = vld [vmem:[%s1 + $0x50] sm:$0xf]
        %v562 = vld [vmem:[%s1 + $0x54] sm:$0xf]
        %v563 = vld [vmem:[%s1 + $0x58] sm:$0xf]
        %v564 = vld [vmem:[%s1 + $0x5c] sm:$0xf]
        %v565 = vld [vmem:[%s1 + $0x60] sm:$0xf]
        %v566 = vld [vmem:[%s1 + $0x64] sm:$0xf]
        %v567 = vld [vmem:[%s1 + $0x68] sm:$0xf]
        %v568 = vld [vmem:[%s1 + $0x6c] sm:$0xf]
        %v569 = vld [vmem:[%s1 + $0x70] sm:$0xf]
        %v570 = vld [vmem:[%s1 + $0x74] sm:$0xf]
        %v571 = vld [vmem:[%s1 + $0x78] sm:$0xf]
        %v572 = vld [vmem:[%s1 + $0x7c] sm:$0xf]
        %v573 = vld [vmem:[%s1 + $0x80] sm:$0xf]
        %v574 = vld [vmem:[%s1 + $0x84] sm:$0xf]
        %v575 = vld [vmem:[%s1 + $0x88] sm:$0xf]
        %v576 = vld [vmem:[%s1 + $0x8c] sm:$0xf]
        %v577 = vld [vmem:[%s1 + $0x90] sm:$0xf]
        %v578 = vld [vmem:[%s1 + $0x94] sm:$0xf]
        %v579 = vld [vmem:[%s1 + $0x98] sm:$0xf]
        %v580 = vld [vmem:[%s1 + $0x9c] sm:$0xf]
        %v581 = vld [vmem:[%s1 + $0xa0] sm:$0xf]
        %v582 = vld [vmem:[%s1 + $0xa4] sm:$0xf]
        %v583 = vld [vmem:[%s1 + $0xa8] sm:$0xf]
        %v584 = vld [vmem:[%s1 + $0xac] sm:$0xf]
        %v585 = vld [vmem:[%s1 + $0xb0] sm:$0xf]
        %v586 = vld [vmem:[%s1 + $0xb4] sm:$0xf]
        %v587 = vld [vmem:[%s1 + $0xb8] sm:$0xf]
        %v588 = vld [vmem:[%s1 + $0xbc] sm:$0xf]
        %v589 = vld [vmem:[%s1 + $0xc0] sm:$0xf]
        %v590 = vld [vmem:[%s1 + $0xc4] sm:$0xf]
        %v591 = vld [vmem:[%s1 + $0xc8] sm:$0xf]
        %v592 = vld [vmem:[%s1 + $0xcc] sm:$0xf]
        %v593 = vld [vmem:[%s1 + $0xd0] sm:$0xf]
        %v594 = vld [vmem:[%s1 + $0xd4] sm:$0xf]
        %v595 = vld [vmem:[%s1 + $0xd8] sm:$0xf]
        %v596 = vld [vmem:[%s1 + $0xdc] sm:$0xf]
        %v597 = vld [vmem:[%s1 + $0xe0] sm:$0xf]
        %v598 = vld [vmem:[%s1 + $0xe4] sm:$0xf]
        %v599 = vld [vmem:[%s1 + $0xe8] sm:$0xf]
        %v600 = vld [vmem:[%s1 + $0xec] sm:$0xf]
        %v601 = vld [vmem:[%s1 + $0xf0] sm:$0xf]
        %v602 = vld [vmem:[%s1 + $0xf4] sm:$0xf]
        %v603 = vld [vmem:[%s1 + $0xf8] sm:$0xf]
        %v604 = vld [vmem:[%s1 + $0xfc] sm:$0xf]
        %v605 = vld [vmem:[%s2] sm:$0xff]
        %v606 = vld [vmem:[%s2 + $0x8] sm:$0xff]
        %v607 = vld [vmem:[%s2 + $0x10] sm:$0xff]
        %v608 = vld [vmem:[%s2 + $0x18] sm:$0xff]
        %v609 = vld [vmem:[%s2 + $0x20] sm:$0xff]
        %v610 = vld [vmem:[%s2 + $0x28] sm:$0xff]
        %v611 = vld [vmem:[%s2 + $0x30] sm:$0xff]
        %v612 = vld [vmem:[%s2 + $0x38] sm:$0xff]
        %v613 = vld [vmem:[%s2 + $0x40] sm:$0xff]
        %v614 = vld [vmem:[%s2 + $0x48] sm:$0xff]
        %v615 = vld [vmem:[%s2 + $0x50] sm:$0xff]
        %v616 = vld [vmem:[%s2 + $0x58] sm:$0xff]
        %v617 = vld [vmem:[%s2 + $0x60] sm:$0xff]
        %v618 = vld [vmem:[%s2 + $0x68] sm:$0xff]
        %v619 = vld [vmem:[%s2 + $0x70] sm:$0xff]
        %v620 = vld [vmem:[%s2 + $0x78] sm:$0xff]
        %v621 = vld [vmem:[%s2 + $0x80] sm:$0xff]
        %v622 = vld [vmem:[%s2 + $0x88] sm:$0xff]
        %v623 = vld [vmem:[%s2 + $0x90] sm:$0xff]
        %v624 = vld [vmem:[%s2 + $0x98] sm:$0xff]
        %v625 = vld [vmem:[%s2 + $0xa0] sm:$0xff]
        %v626 = vld [vmem:[%s2 + $0xa8] sm:$0xff]
        %v627 = vld [vmem:[%s2 + $0xb0] sm:$0xff]
        %v628 = vld [vmem:[%s2 + $0xb8] sm:$0xff]
        %v629 = vld [vmem:[%s2 + $0xc0] sm:$0xff]
        %v630 = vld [vmem:[%s2 + $0xc8] sm:$0xff]
        %v631 = vld [vmem:[%s2 + $0xd0] sm:$0xff]
        %v632 = vld [vmem:[%s2 + $0xd8] sm:$0xff]
        %v633 = vld [vmem:[%s2 + $0xe0] sm:$0xff]
        %v634 = vld [vmem:[%s2 + $0xe8] sm:$0xff]
        %v635 = vld [vmem:[%s2 + $0xf0] sm:$0xff]
        %v636 = vld [vmem:[%s2 + $0xf8] sm:$0xff]
        %v637 = vld [vmem:[%s2 + $0x100] sm:$0xff]
        %v638 = vld [vmem:[%s2 + $0x108] sm:$0xff]
        %v639 = vld [vmem:[%s2 + $0x110] sm:$0xff]
        %v640 = vld [vmem:[%s2 + $0x118] sm:$0xff]
        %v641 = vld [vmem:[%s2 + $0x120] sm:$0xff]
        %v642 = vld [vmem:[%s2 + $0x128] sm:$0xff]
        %v643 = vld [vmem:[%s2 + $0x130] sm:$0xff]
        %v644 = vld [vmem:[%s2 + $0x138] sm:$0xff]
        %v645 = vld [vmem:[%s2 + $0x140] sm:$0xff]
        %v646 = vld [vmem:[%s2 + $0x148] sm:$0xff]
        %v647 = vld [vmem:[%s2 + $0x150] sm:$0xff]
        %v648 = vld [vmem:[%s2 + $0x158] sm:$0xff]
        %v649 = vld [vmem:[%s2 + $0x160] sm:$0xff]
        %v650 = vld [vmem:[%s2 + $0x168] sm:$0xff]
        %v651 = vld [vmem:[%s2 + $0x170] sm:$0xff]
        %v652 = vld [vmem:[%s2 + $0x178] sm:$0xff]
        %v653 = vld [vmem:[%s2 + $0x180] sm:$0xff]
        %v654 = vld [vmem:[%s2 + $0x188] sm:$0xff]
        %v655 = vld [vmem:[%s2 + $0x190] sm:$0xff]
        %v656 = vld [vmem:[%s2 + $0x198] sm:$0xff]
        %v657 = vld [vmem:[%s2 + $0x1a0] sm:$0xff]
        %v658 = vld [vmem:[%s2 + $0x1a8] sm:$0xff]
        %v659 = vld [vmem:[%s2 + $0x1b0] sm:$0xff]
        %v660 = vld [vmem:[%s2 + $0x1b8] sm:$0xff]
        %v661 = vld [vmem:[%s2 + $0x1c0] sm:$0xff]
        %v662 = vld [vmem:[%s2 + $0x1c8] sm:$0xff]
        %v663 = vld [vmem:[%s2 + $0x1d0] sm:$0xff]
        %v664 = vld [vmem:[%s2 + $0x1d8] sm:$0xff]
        %v665 = vld [vmem:[%s2 + $0x1e0] sm:$0xff]
        %v666 = vld [vmem:[%s2 + $0x1e8] sm:$0xff]
        %v667 = vld [vmem:[%s2 + $0x1f0] sm:$0xff]
        %v668 = vld [vmem:[%s2 + $0x1f8] sm:$0xff]
        %670 = vset.pattern.permute.xlu0 0
        %671 = vperm.xlu0 %670, %v605
        %v672 = vpop.permute.xlu0 %671
        %675 = vset.pattern.permute.xlu0 0
        %676 = vperm.xlu0 %675, %v606
        %v677 = vpop.permute.xlu0 %676
        %680 = vset.pattern.permute.xlu0 0
        %681 = vperm.xlu0 %680, %v607
        %v682 = vpop.permute.xlu0 %681
        %685 = vset.pattern.permute.xlu0 0
        %686 = vperm.xlu0 %685, %v608
        %v687 = vpop.permute.xlu0 %686
        %690 = vset.pattern.permute.xlu0 0
        %691 = vperm.xlu0 %690, %v609
        %v692 = vpop.permute.xlu0 %691
        %695 = vset.pattern.permute.xlu0 0
        %696 = vperm.xlu0 %695, %v610
        %v697 = vpop.permute.xlu0 %696
        %700 = vset.pattern.permute.xlu0 0
        %701 = vperm.xlu0 %700, %v611
        %v702 = vpop.permute.xlu0 %701
        %705 = vset.pattern.permute.xlu0 0
        %706 = vperm.xlu0 %705, %v612
        %v707 = vpop.permute.xlu0 %706
        %710 = vset.pattern.permute.xlu0 0
        %711 = vperm.xlu0 %710, %v613
        %v712 = vpop.permute.xlu0 %711
        %715 = vset.pattern.permute.xlu0 0
        %716 = vperm.xlu0 %715, %v614
        %v717 = vpop.permute.xlu0 %716
        %720 = vset.pattern.permute.xlu0 0
        %721 = vperm.xlu0 %720, %v615
        %v722 = vpop.permute.xlu0 %721
        %725 = vset.pattern.permute.xlu0 0
        %726 = vperm.xlu0 %725, %v616
        %v727 = vpop.permute.xlu0 %726
        %730 = vset.pattern.permute.xlu0 0
        %731 = vperm.xlu0 %730, %v617
        %v732 = vpop.permute.xlu0 %731
        %735 = vset.pattern.permute.xlu0 0
        %736 = vperm.xlu0 %735, %v618
        %v737 = vpop.permute.xlu0 %736
        %740 = vset.pattern.permute.xlu0 0
        %741 = vperm.xlu0 %740, %v619
        %v742 = vpop.permute.xlu0 %741
        %745 = vset.pattern.permute.xlu0 0
        %746 = vperm.xlu0 %745, %v620
        %v747 = vpop.permute.xlu0 %746
        %750 = vset.pattern.permute.xlu0 0
        %751 = vperm.xlu0 %750, %v621
        %v752 = vpop.permute.xlu0 %751
        %755 = vset.pattern.permute.xlu0 0
        %756 = vperm.xlu0 %755, %v622
        %v757 = vpop.permute.xlu0 %756
        %760 = vset.pattern.permute.xlu0 0
        %761 = vperm.xlu0 %760, %v623
        %v762 = vpop.permute.xlu0 %761
        %765 = vset.pattern.permute.xlu0 0
        %766 = vperm.xlu0 %765, %v624
        %v767 = vpop.permute.xlu0 %766
        %770 = vset.pattern.permute.xlu0 0
        %771 = vperm.xlu0 %770, %v625
        %v772 = vpop.permute.xlu0 %771
        %775 = vset.pattern.permute.xlu0 0
        %776 = vperm.xlu0 %775, %v626
        %v777 = vpop.permute.xlu0 %776
        %780 = vset.pattern.permute.xlu0 0
        %781 = vperm.xlu0 %780, %v627
        %v782 = vpop.permute.xlu0 %781
        %785 = vset.pattern.permute.xlu0 0
        %786 = vperm.xlu0 %785, %v628
        %v787 = vpop.permute.xlu0 %786
        %790 = vset.pattern.permute.xlu0 0
        %791 = vperm.xlu0 %790, %v629
        %v792 = vpop.permute.xlu0 %791
        %795 = vset.pattern.permute.xlu0 0
        %796 = vperm.xlu0 %795, %v630
        %v797 = vpop.permute.xlu0 %796
        %800 = vset.pattern.permute.xlu0 0
        %801 = vperm.xlu0 %800, %v631
        %v802 = vpop.permute.xlu0 %801
        %805 = vset.pattern.permute.xlu0 0
        %806 = vperm.xlu0 %805, %v632
        %v807 = vpop.permute.xlu0 %806
        %810 = vset.pattern.permute.xlu0 0
        %811 = vperm.xlu0 %810, %v633
        %v812 = vpop.permute.xlu0 %811
        %815 = vset.pattern.permute.xlu0 0
        %816 = vperm.xlu0 %815, %v634
        %v817 = vpop.permute.xlu0 %816
        %820 = vset.pattern.permute.xlu0 0
        %821 = vperm.xlu0 %820, %v635
        %v822 = vpop.permute.xlu0 %821
        %825 = vset.pattern.permute.xlu0 0
        %826 = vperm.xlu0 %825, %v636
        %v827 = vpop.permute.xlu0 %826
        %830 = vset.pattern.permute.xlu0 0
        %831 = vperm.xlu0 %830, %v637
        %v832 = vpop.permute.xlu0 %831
        %835 = vset.pattern.permute.xlu0 0
        %836 = vperm.xlu0 %835, %v638
        %v837 = vpop.permute.xlu0 %836
        %840 = vset.pattern.permute.xlu0 0
        %841 = vperm.xlu0 %840, %v639
        %v842 = vpop.permute.xlu0 %841
        %845 = vset.pattern.permute.xlu0 0
        %846 = vperm.xlu0 %845, %v640
        %v847 = vpop.permute.xlu0 %846
        %850 = vset.pattern.permute.xlu0 0
        %851 = vperm.xlu0 %850, %v641
        %v852 = vpop.permute.xlu0 %851
        %855 = vset.pattern.permute.xlu0 0
        %856 = vperm.xlu0 %855, %v642
        %v857 = vpop.permute.xlu0 %856
        %860 = vset.pattern.permute.xlu0 0
        %861 = vperm.xlu0 %860, %v643
        %v862 = vpop.permute.xlu0 %861
        %865 = vset.pattern.permute.xlu0 0
        %866 = vperm.xlu0 %865, %v644
        %v867 = vpop.permute.xlu0 %866
        %870 = vset.pattern.permute.xlu0 0
        %871 = vperm.xlu0 %870, %v645
        %v872 = vpop.permute.xlu0 %871
        %875 = vset.pattern.permute.xlu0 0
        %876 = vperm.xlu0 %875, %v646
        %v877 = vpop.permute.xlu0 %876
        %880 = vset.pattern.permute.xlu0 0
        %881 = vperm.xlu0 %880, %v647
        %v882 = vpop.permute.xlu0 %881
        %885 = vset.pattern.permute.xlu0 0
        %886 = vperm.xlu0 %885, %v648
        %v887 = vpop.permute.xlu0 %886
        %890 = vset.pattern.permute.xlu0 0
        %891 = vperm.xlu0 %890, %v649
        %v892 = vpop.permute.xlu0 %891
        %895 = vset.pattern.permute.xlu0 0
        %896 = vperm.xlu0 %895, %v650
        %v897 = vpop.permute.xlu0 %896
        %900 = vset.pattern.permute.xlu0 0
        %901 = vperm.xlu0 %900, %v651
        %v902 = vpop.permute.xlu0 %901
        %905 = vset.pattern.permute.xlu0 0
        %906 = vperm.xlu0 %905, %v652
        %v907 = vpop.permute.xlu0 %906
        %910 = vset.pattern.permute.xlu0 0
        %911 = vperm.xlu0 %910, %v653
        %v912 = vpop.permute.xlu0 %911
        %915 = vset.pattern.permute.xlu0 0
        %916 = vperm.xlu0 %915, %v654
        %v917 = vpop.permute.xlu0 %916
        %920 = vset.pattern.permute.xlu0 0
        %921 = vperm.xlu0 %920, %v655
        %v922 = vpop.permute.xlu0 %921
        %925 = vset.pattern.permute.xlu0 0
        %926 = vperm.xlu0 %925, %v656
        %v927 = vpop.permute.xlu0 %926
        %930 = vset.pattern.permute.xlu0 0
        %931 = vperm.xlu0 %930, %v657
        %v932 = vpop.permute.xlu0 %931
        %935 = vset.pattern.permute.xlu0 0
        %936 = vperm.xlu0 %935, %v658
        %v937 = vpop.permute.xlu0 %936
        %940 = vset.pattern.permute.xlu0 0
        %941 = vperm.xlu0 %940, %v659
        %v942 = vpop.permute.xlu0 %941
        %945 = vset.pattern.permute.xlu0 0
        %946 = vperm.xlu0 %945, %v660
        %v947 = vpop.permute.xlu0 %946
        %950 = vset.pattern.permute.xlu0 0
        %951 = vperm.xlu0 %950, %v661
        %v952 = vpop.permute.xlu0 %951
        %955 = vset.pattern.permute.xlu0 0
        %956 = vperm.xlu0 %955, %v662
        %v957 = vpop.permute.xlu0 %956
        %960 = vset.pattern.permute.xlu0 0
        %961 = vperm.xlu0 %960, %v663
        %v962 = vpop.permute.xlu0 %961
        %965 = vset.pattern.permute.xlu0 0
        %966 = vperm.xlu0 %965, %v664
        %v967 = vpop.permute.xlu0 %966
        %970 = vset.pattern.permute.xlu0 0
        %971 = vperm.xlu0 %970, %v665
        %v972 = vpop.permute.xlu0 %971
        %975 = vset.pattern.permute.xlu0 0
        %976 = vperm.xlu0 %975, %v666
        %v977 = vpop.permute.xlu0 %976
        %980 = vset.pattern.permute.xlu0 0
        %981 = vperm.xlu0 %980, %v667
        %v982 = vpop.permute.xlu0 %981
        %985 = vset.pattern.permute.xlu0 0
        %986 = vperm.xlu0 %985, %v668
        %v987 = vpop.permute.xlu0 %986
        %v1053 = vunpack.c.l.b16 %v541
        %v1054 = vunpack.c.l.b16 %v542
        %v1055 = vunpack.c.l.b16 %v543
        %v1056 = vunpack.c.l.b16 %v544
        %v1057 = vunpack.c.l.b16 %v545
        %v1058 = vunpack.c.l.b16 %v546
        %v1059 = vunpack.c.l.b16 %v547
        %v1060 = vunpack.c.l.b16 %v548
        %v1061 = vunpack.c.l.b16 %v549
        %v1062 = vunpack.c.l.b16 %v550
        %v1063 = vunpack.c.l.b16 %v551
        %v1064 = vunpack.c.l.b16 %v552
        %v1065 = vunpack.c.l.b16 %v553
        %v1066 = vunpack.c.l.b16 %v554
        %v1067 = vunpack.c.l.b16 %v555
        %v1068 = vunpack.c.l.b16 %v556
        %v1069 = vunpack.c.l.b16 %v557
        %v1070 = vunpack.c.l.b16 %v558
        %v1071 = vunpack.c.l.b16 %v559
        %v1072 = vunpack.c.l.b16 %v560
        %v1073 = vunpack.c.l.b16 %v561
        %v1074 = vunpack.c.l.b16 %v562
        %v1075 = vunpack.c.l.b16 %v563
        %v1076 = vunpack.c.l.b16 %v564
        %v1077 = vunpack.c.l.b16 %v565
        %v1078 = vunpack.c.l.b16 %v566
        %v1079 = vunpack.c.l.b16 %v567
        %v1080 = vunpack.c.l.b16 %v568
        %v1081 = vunpack.c.l.b16 %v569
        %v1082 = vunpack.c.l.b16 %v570
        %v1083 = vunpack.c.l.b16 %v571
        %v1084 = vunpack.c.l.b16 %v572
        %v1085 = vunpack.c.l.b16 %v573
        %v1086 = vunpack.c.l.b16 %v574
        %v1087 = vunpack.c.l.b16 %v575
        %v1088 = vunpack.c.l.b16 %v576
        %v1089 = vunpack.c.l.b16 %v577
        %v1090 = vunpack.c.l.b16 %v578
        %v1091 = vunpack.c.l.b16 %v579
        %v1092 = vunpack.c.l.b16 %v580
        %v1093 = vunpack.c.l.b16 %v581
        %v1094 = vunpack.c.l.b16 %v582
        %v1095 = vunpack.c.l.b16 %v583
        %v1096 = vunpack.c.l.b16 %v584
        %v1097 = vunpack.c.l.b16 %v585
        %v1098 = vunpack.c.l.b16 %v586
        %v1099 = vunpack.c.l.b16 %v587
        %v1100 = vunpack.c.l.b16 %v588
        %v1101 = vunpack.c.l.b16 %v589
        %v1102 = vunpack.c.l.b16 %v590
        %v1103 = vunpack.c.l.b16 %v591
        %v1104 = vunpack.c.l.b16 %v592
        %v1105 = vunpack.c.l.b16 %v593
        %v1106 = vunpack.c.l.b16 %v594
        %v1107 = vunpack.c.l.b16 %v595
        %v1108 = vunpack.c.l.b16 %v596
        %v1109 = vunpack.c.l.b16 %v597
        %v1110 = vunpack.c.l.b16 %v598
        %v1111 = vunpack.c.l.b16 %v599
        %v1112 = vunpack.c.l.b16 %v600
        %v1113 = vunpack.c.l.b16 %v601
        %v1114 = vunpack.c.l.b16 %v602
        %v1115 = vunpack.c.l.b16 %v603
        %v1116 = vunpack.c.l.b16 %v604
        %v1117 = vpack.c.b16 %v1054, %v1053
        %v1118 = vpack.c.b16 %v1056, %v1055
        %v1119 = vpack.c.b16 %v1058, %v1057
        %v1120 = vpack.c.b16 %v1060, %v1059
        %v1121 = vpack.c.b16 %v1062, %v1061
        %v1122 = vpack.c.b16 %v1064, %v1063
        %v1123 = vpack.c.b16 %v1066, %v1065
        %v1124 = vpack.c.b16 %v1068, %v1067
        %v1125 = vpack.c.b16 %v1070, %v1069
        %v1126 = vpack.c.b16 %v1072, %v1071
        %v1127 = vpack.c.b16 %v1074, %v1073
        %v1128 = vpack.c.b16 %v1076, %v1075
        %v1129 = vpack.c.b16 %v1078, %v1077
        %v1130 = vpack.c.b16 %v1080, %v1079
        %v1131 = vpack.c.b16 %v1082, %v1081
        %v1132 = vpack.c.b16 %v1084, %v1083
        %v1133 = vpack.c.b16 %v1086, %v1085
        %v1134 = vpack.c.b16 %v1088, %v1087
        %v1135 = vpack.c.b16 %v1090, %v1089
        %v1136 = vpack.c.b16 %v1092, %v1091
        %v1137 = vpack.c.b16 %v1094, %v1093
        %v1138 = vpack.c.b16 %v1096, %v1095
        %v1139 = vpack.c.b16 %v1098, %v1097
        %v1140 = vpack.c.b16 %v1100, %v1099
        %v1141 = vpack.c.b16 %v1102, %v1101
        %v1142 = vpack.c.b16 %v1104, %v1103
        %v1143 = vpack.c.b16 %v1106, %v1105
        %v1144 = vpack.c.b16 %v1108, %v1107
        %v1145 = vpack.c.b16 %v1110, %v1109
        %v1146 = vpack.c.b16 %v1112, %v1111
        %v1147 = vpack.c.b16 %v1114, %v1113
        %v1148 = vpack.c.b16 %v1116, %v1115
        %vm1149 = vcmask 261120
        %v1151 = vsel %vm1149, %v1117, 0
        %v1154 = vsel %vm1149, %v1118, 0
        %v1157 = vsel %vm1149, %v1119, 0
        %v1160 = vsel %vm1149, %v1120, 0
        %v1163 = vsel %vm1149, %v1121, 0
        %v1166 = vsel %vm1149, %v1122, 0
        %v1169 = vsel %vm1149, %v1123, 0
        %v1172 = vsel %vm1149, %v1124, 0
        %v1175 = vsel %vm1149, %v1125, 0
        %v1178 = vsel %vm1149, %v1126, 0
        %v1181 = vsel %vm1149, %v1127, 0
        %v1184 = vsel %vm1149, %v1128, 0
        %v1187 = vsel %vm1149, %v1129, 0
        %v1190 = vsel %vm1149, %v1130, 0
        %v1193 = vsel %vm1149, %v1131, 0
        %v1196 = vsel %vm1149, %v1132, 0
        %v1199 = vsel %vm1149, %v1133, 0
        %v1202 = vsel %vm1149, %v1134, 0
        %v1205 = vsel %vm1149, %v1135, 0
        %v1208 = vsel %vm1149, %v1136, 0
        %v1211 = vsel %vm1149, %v1137, 0
        %v1214 = vsel %vm1149, %v1138, 0
        %v1217 = vsel %vm1149, %v1139, 0
        %v1220 = vsel %vm1149, %v1140, 0
        %v1223 = vsel %vm1149, %v1141, 0
        %v1226 = vsel %vm1149, %v1142, 0
        %v1229 = vsel %vm1149, %v1143, 0
        %v1232 = vsel %vm1149, %v1144, 0
        %v1235 = vsel %vm1149, %v1145, 0
        %v1238 = vsel %vm1149, %v1146, 0
        %v1241 = vsel %vm1149, %v1147, 0
        %v1244 = vsel %vm1149, %v1148, 0
        %v1247 = vsel %vm1149, %v533, 0
        %v1250 = vsel %vm1149, %v534, 0
        %v1253 = vsel %vm1149, %v535, 0
        %v1256 = vsel %vm1149, %v536, 0
        %v1259 = vsel %vm1149, %v537, 0
        %v1262 = vsel %vm1149, %v538, 0
        %v1265 = vsel %vm1149, %v539, 0
        %v1268 = vsel %vm1149, %v540, 0
        %1270 = vmatprep.subr.bf16.mxu0 0
        %1271 = vmatpush1.bf16.xpose.msra.mxu0 %v1247
        %1272 = vmatprep.subr.bf16.mxu0 0
        %1273 = vmatpush1.bf16.xpose.msra.mxu0 %v1250
        %1274 = vmatprep.subr.bf16.mxu0 0
        %1275 = vmatpush1.bf16.xpose.msra.mxu0 %v1253
        %1276 = vmatprep.subr.bf16.mxu0 0
        %1277 = vmatpush1.bf16.xpose.msra.mxu0 %v1256
        %1278 = vmatprep.subr.bf16.mxu0 0
        %1279 = vmatpush1.bf16.xpose.msra.mxu0 %v1259
        %1280 = vmatprep.subr.bf16.mxu0 0
        %1281 = vmatpush1.bf16.xpose.msra.mxu0 %v1262
        %1282 = vmatprep.subr.bf16.mxu0 0
        %1283 = vmatpush1.bf16.xpose.msra.mxu0 %v1265
        %1284 = vmatprep.subr.bf16.mxu0 0
        %1285 = vmatpush1.bf16.xpose.msra.mxu0 %v1268
        %1286 = vmatprep.subr.bf16.mxu0 0
        %1287 = vmatpush1.bf16.xpose.msra.mxu0 0
        %1288 = vmatprep.subr.bf16.mxu0 0
        %1289 = vmatpush1.bf16.xpose.msra.mxu0 0
        %1290 = vmatprep.subr.bf16.mxu0 0
        %1291 = vmatpush1.bf16.xpose.msra.mxu0 0
        %1292 = vmatprep.subr.bf16.mxu0 0
        %1293 = vmatpush1.bf16.xpose.msra.mxu0 0
        %1294 = vmatprep.subr.bf16.mxu0 0
        %1295 = vmatpush1.bf16.xpose.msra.mxu0 0
        %1296 = vmatprep.subr.bf16.mxu0 0
        %1297 = vmatpush1.bf16.xpose.msra.mxu0 0
        %1298 = vmatprep.subr.bf16.mxu0 0
        %1299 = vmatpush1.bf16.xpose.msra.mxu0 0
        %1300 = vmatprep.subr.bf16.mxu0 0
        %1301 = vmatpush1.bf16.xpose.msra.mxu0 0
        %1302 = vmatprep.mubr.bf16.mxu0 0
        %1303 = vmatmul.mubr.bf16.gmra.mrb[0].mxu0 %v1151
        %v1304 = vpop.f32.mrb[0].mxu0
        %v1305 = vadd.f32 %v672, %v1304
        %v1306 = vpop.f32.mrb[0].mxu0
        %v1307 = vpop.f32.mrb[0].mxu0
        %v1308 = vadd.f32 %v677, %v1307
        %v1309 = vpop.f32.mrb[0].mxu0
        %1310 = vmatprep.mubr.bf16.mxu0 0
        %1311 = vmatmul.mubr.bf16.gmra.mrb[0].mxu0 %v1154
        %v1312 = vpop.f32.mrb[0].mxu0
        %v1313 = vadd.f32 %v682, %v1312
        %v1314 = vpop.f32.mrb[0].mxu0
        %v1315 = vpop.f32.mrb[0].mxu0
        %v1316 = vadd.f32 %v687, %v1315
        %v1317 = vpop.f32.mrb[0].mxu0
        %1318 = vmatprep.mubr.bf16.mxu0 0
        %1319 = vmatmul.mubr.bf16.gmra.mrb[0].mxu0 %v1157
        %v1320 = vpop.f32.mrb[0].mxu0
        %v1321 = vadd.f32 %v692, %v1320
        %v1322 = vpop.f32.mrb[0].mxu0
        %v1323 = vpop.f32.mrb[0].mxu0
        %v1324 = vadd.f32 %v697, %v1323
        %v1325 = vpop.f32.mrb[0].mxu0
        %1326 = vmatprep.mubr.bf16.mxu0 0
        %1327 = vmatmul.mubr.bf16.gmra.mrb[0].mxu0 %v1160
        %v1328 = vpop.f32.mrb[0].mxu0
        %v1329 = vadd.f32 %v702, %v1328
        %v1330 = vpop.f32.mrb[0].mxu0
        %v1331 = vpop.f32.mrb[0].mxu0
        %v1332 = vadd.f32 %v707, %v1331
        %v1333 = vpop.f32.mrb[0].mxu0
        %1334 = vmatprep.mubr.bf16.mxu0 0
        %1335 = vmatmul.mubr.bf16.gmra.mrb[0].mxu0 %v1163
        %v1336 = vpop.f32.mrb[0].mxu0
        %v1337 = vadd.f32 %v712, %v1336
        %v1338 = vpop.f32.mrb[0].mxu0
        %v1339 = vpop.f32.mrb[0].mxu0
        %v1340 = vadd.f32 %v717, %v1339
        %v1341 = vpop.f32.mrb[0].mxu0
        %1342 = vmatprep.mubr.bf16.mxu0 0
        %1343 = vmatmul.mubr.bf16.gmra.mrb[0].mxu0 %v1166
        %v1344 = vpop.f32.mrb[0].mxu0
        %v1345 = vadd.f32 %v722, %v1344
        %v1346 = vpop.f32.mrb[0].mxu0
        %v1347 = vpop.f32.mrb[0].mxu0
        %v1348 = vadd.f32 %v727, %v1347
        %v1349 = vpop.f32.mrb[0].mxu0
        %1350 = vmatprep.mubr.bf16.mxu0 0
        %1351 = vmatmul.mubr.bf16.gmra.mrb[0].mxu0 %v1169
        %v1352 = vpop.f32.mrb[0].mxu0
        %v1353 = vadd.f32 %v732, %v1352
        %v1354 = vpop.f32.mrb[0].mxu0
        %v1355 = vpop.f32.mrb[0].mxu0
        %v1356 = vadd.f32 %v737, %v1355
        %v1357 = vpop.f32.mrb[0].mxu0
        %1358 = vmatprep.mubr.bf16.mxu0 0
        %1359 = vmatmul.mubr.bf16.gmra.mrb[0].mxu0 %v1172
        %v1360 = vpop.f32.mrb[0].mxu0
        %v1361 = vadd.f32 %v742, %v1360
        %v1362 = vpop.f32.mrb[0].mxu0
        %v1363 = vpop.f32.mrb[0].mxu0
        %v1364 = vadd.f32 %v747, %v1363
        %v1365 = vpop.f32.mrb[0].mxu0
        %1366 = vmatprep.mubr.bf16.mxu0 0
        %1367 = vmatmul.mubr.bf16.gmra.mrb[0].mxu0 %v1175
        %v1368 = vpop.f32.mrb[0].mxu0
        %v1369 = vadd.f32 %v752, %v1368
        %v1370 = vpop.f32.mrb[0].mxu0
        %v1371 = vpop.f32.mrb[0].mxu0
        %v1372 = vadd.f32 %v757, %v1371
        %v1373 = vpop.f32.mrb[0].mxu0
        %1374 = vmatprep.mubr.bf16.mxu0 0
        %1375 = vmatmul.mubr.bf16.gmra.mrb[0].mxu0 %v1178
        %v1376 = vpop.f32.mrb[0].mxu0
        %v1377 = vadd.f32 %v762, %v1376
        %v1378 = vpop.f32.mrb[0].mxu0
        %v1379 = vpop.f32.mrb[0].mxu0
        %v1380 = vadd.f32 %v767, %v1379
        %v1381 = vpop.f32.mrb[0].mxu0
        %1382 = vmatprep.mubr.bf16.mxu0 0
        %1383 = vmatmul.mubr.bf16.gmra.mrb[0].mxu0 %v1181
        %v1384 = vpop.f32.mrb[0].mxu0
        %v1385 = vadd.f32 %v772, %v1384
        %v1386 = vpop.f32.mrb[0].mxu0
        %v1387 = vpop.f32.mrb[0].mxu0
        %v1388 = vadd.f32 %v777, %v1387
        %v1389 = vpop.f32.mrb[0].mxu0
        %1390 = vmatprep.mubr.bf16.mxu0 0
        %1391 = vmatmul.mubr.bf16.gmra.mrb[0].mxu0 %v1184
        %v1392 = vpop.f32.mrb[0].mxu0
        %v1393 = vadd.f32 %v782, %v1392
        %v1394 = vpop.f32.mrb[0].mxu0
        %v1395 = vpop.f32.mrb[0].mxu0
        %v1396 = vadd.f32 %v787, %v1395
        %v1397 = vpop.f32.mrb[0].mxu0
        %1398 = vmatprep.mubr.bf16.mxu0 0
        %1399 = vmatmul.mubr.bf16.gmra.mrb[0].mxu0 %v1187
        %v1400 = vpop.f32.mrb[0].mxu0
        %v1401 = vadd.f32 %v792, %v1400
        %v1402 = vpop.f32.mrb[0].mxu0
        %v1403 = vpop.f32.mrb[0].mxu0
        %v1404 = vadd.f32 %v797, %v1403
        %v1405 = vpop.f32.mrb[0].mxu0
        %1406 = vmatprep.mubr.bf16.mxu0 0
        %1407 = vmatmul.mubr.bf16.gmra.mrb[0].mxu0 %v1190
        %v1408 = vpop.f32.mrb[0].mxu0
        %v1409 = vadd.f32 %v802, %v1408
        %v1410 = vpop.f32.mrb[0].mxu0
        %v1411 = vpop.f32.mrb[0].mxu0
        %v1412 = vadd.f32 %v807, %v1411
        %v1413 = vpop.f32.mrb[0].mxu0
        %1414 = vmatprep.mubr.bf16.mxu0 0
        %1415 = vmatmul.mubr.bf16.gmra.mrb[0].mxu0 %v1193
        %v1416 = vpop.f32.mrb[0].mxu0
        %v1417 = vadd.f32 %v812, %v1416
        %v1418 = vpop.f32.mrb[0].mxu0
        %v1419 = vpop.f32.mrb[0].mxu0
        %v1420 = vadd.f32 %v817, %v1419
        %v1421 = vpop.f32.mrb[0].mxu0
        %1422 = vmatprep.mubr.bf16.mxu0 0
        %1423 = vmatmul.mubr.bf16.gmra.mrb[0].mxu0 %v1196
        %v1424 = vpop.f32.mrb[0].mxu0
        %v1425 = vadd.f32 %v822, %v1424
        %v1426 = vpop.f32.mrb[0].mxu0
        %v1427 = vpop.f32.mrb[0].mxu0
        %v1428 = vadd.f32 %v827, %v1427
        %v1429 = vpop.f32.mrb[0].mxu0
        %1430 = vmatprep.mubr.bf16.mxu0 0
        %1431 = vmatmul.mubr.bf16.gmra.mrb[0].mxu0 %v1199
        %v1432 = vpop.f32.mrb[0].mxu0
        %v1433 = vadd.f32 %v832, %v1432
        %v1434 = vpop.f32.mrb[0].mxu0
        %v1435 = vpop.f32.mrb[0].mxu0
        %v1436 = vadd.f32 %v837, %v1435
        %v1437 = vpop.f32.mrb[0].mxu0
        %1438 = vmatprep.mubr.bf16.mxu0 0
        %1439 = vmatmul.mubr.bf16.gmra.mrb[0].mxu0 %v1202
        %v1440 = vpop.f32.mrb[0].mxu0
        %v1441 = vadd.f32 %v842, %v1440
        %v1442 = vpop.f32.mrb[0].mxu0
        %v1443 = vpop.f32.mrb[0].mxu0
        %v1444 = vadd.f32 %v847, %v1443
        %v1445 = vpop.f32.mrb[0].mxu0
        %1446 = vmatprep.mubr.bf16.mxu0 0
        %1447 = vmatmul.mubr.bf16.gmra.mrb[0].mxu0 %v1205
        %v1448 = vpop.f32.mrb[0].mxu0
        %v1449 = vadd.f32 %v852, %v1448
        %v1450 = vpop.f32.mrb[0].mxu0
        %v1451 = vpop.f32.mrb[0].mxu0
        %v1452 = vadd.f32 %v857, %v1451
        %v1453 = vpop.f32.mrb[0].mxu0
        %1454 = vmatprep.mubr.bf16.mxu0 0
        %1455 = vmatmul.mubr.bf16.gmra.mrb[0].mxu0 %v1208
        %v1456 = vpop.f32.mrb[0].mxu0
        %v1457 = vadd.f32 %v862, %v1456
        %v1458 = vpop.f32.mrb[0].mxu0
        %v1459 = vpop.f32.mrb[0].mxu0
        %v1460 = vadd.f32 %v867, %v1459
        %v1461 = vpop.f32.mrb[0].mxu0
        %1462 = vmatprep.mubr.bf16.mxu0 0
        %1463 = vmatmul.mubr.bf16.gmra.mrb[0].mxu0 %v1211
        %v1464 = vpop.f32.mrb[0].mxu0
        %v1465 = vadd.f32 %v872, %v1464
        %v1466 = vpop.f32.mrb[0].mxu0
        %v1467 = vpop.f32.mrb[0].mxu0
        %v1468 = vadd.f32 %v877, %v1467
        %v1469 = vpop.f32.mrb[0].mxu0
        %1470 = vmatprep.mubr.bf16.mxu0 0
        %1471 = vmatmul.mubr.bf16.gmra.mrb[0].mxu0 %v1214
        %v1472 = vpop.f32.mrb[0].mxu0
        %v1473 = vadd.f32 %v882, %v1472
        %v1474 = vpop.f32.mrb[0].mxu0
        %v1475 = vpop.f32.mrb[0].mxu0
        %v1476 = vadd.f32 %v887, %v1475
        %v1477 = vpop.f32.mrb[0].mxu0
        %1478 = vmatprep.mubr.bf16.mxu0 0
        %1479 = vmatmul.mubr.bf16.gmra.mrb[0].mxu0 %v1217
        %v1480 = vpop.f32.mrb[0].mxu0
        %v1481 = vadd.f32 %v892, %v1480
        %v1482 = vpop.f32.mrb[0].mxu0
        %v1483 = vpop.f32.mrb[0].mxu0
        %v1484 = vadd.f32 %v897, %v1483
        %v1485 = vpop.f32.mrb[0].mxu0
        %1486 = vmatprep.mubr.bf16.mxu0 0
        %1487 = vmatmul.mubr.bf16.gmra.mrb[0].mxu0 %v1220
        %v1488 = vpop.f32.mrb[0].mxu0
        %v1489 = vadd.f32 %v902, %v1488
        %v1490 = vpop.f32.mrb[0].mxu0
        %v1491 = vpop.f32.mrb[0].mxu0
        %v1492 = vadd.f32 %v907, %v1491
        %v1493 = vpop.f32.mrb[0].mxu0
        %1494 = vmatprep.mubr.bf16.mxu0 0
        %1495 = vmatmul.mubr.bf16.gmra.mrb[0].mxu0 %v1223
        %v1496 = vpop.f32.mrb[0].mxu0
        %v1497 = vadd.f32 %v912, %v1496
        %v1498 = vpop.f32.mrb[0].mxu0
        %v1499 = vpop.f32.mrb[0].mxu0
        %v1500 = vadd.f32 %v917, %v1499
        %v1501 = vpop.f32.mrb[0].mxu0
        %1502 = vmatprep.mubr.bf16.mxu0 0
        %1503 = vmatmul.mubr.bf16.gmra.mrb[0].mxu0 %v1226
        %v1504 = vpop.f32.mrb[0].mxu0
        %v1505 = vadd.f32 %v922, %v1504
        %v1506 = vpop.f32.mrb[0].mxu0
        %v1507 = vpop.f32.mrb[0].mxu0
        %v1508 = vadd.f32 %v927, %v1507
        %v1509 = vpop.f32.mrb[0].mxu0
        %1510 = vmatprep.mubr.bf16.mxu0 0
        %1511 = vmatmul.mubr.bf16.gmra.mrb[0].mxu0 %v1229
        %v1512 = vpop.f32.mrb[0].mxu0
        %v1513 = vadd.f32 %v932, %v1512
        %v1514 = vpop.f32.mrb[0].mxu0
        %v1515 = vpop.f32.mrb[0].mxu0
        %v1516 = vadd.f32 %v937, %v1515
        %v1517 = vpop.f32.mrb[0].mxu0
        %1518 = vmatprep.mubr.bf16.mxu0 0
        %1519 = vmatmul.mubr.bf16.gmra.mrb[0].mxu0 %v1232
        %v1520 = vpop.f32.mrb[0].mxu0
        %v1521 = vadd.f32 %v942, %v1520
        %v1522 = vpop.f32.mrb[0].mxu0
        %v1523 = vpop.f32.mrb[0].mxu0
        %v1524 = vadd.f32 %v947, %v1523
        %v1525 = vpop.f32.mrb[0].mxu0
        %1526 = vmatprep.mubr.bf16.mxu0 0
        %1527 = vmatmul.mubr.bf16.gmra.mrb[0].mxu0 %v1235
        %v1528 = vpop.f32.mrb[0].mxu0
        %v1529 = vadd.f32 %v952, %v1528
        %v1530 = vpop.f32.mrb[0].mxu0
        %v1531 = vpop.f32.mrb[0].mxu0
        %v1532 = vadd.f32 %v957, %v1531
        %v1533 = vpop.f32.mrb[0].mxu0
        %1534 = vmatprep.mubr.bf16.mxu0 0
        %1535 = vmatmul.mubr.bf16.gmra.mrb[0].mxu0 %v1238
        %v1536 = vpop.f32.mrb[0].mxu0
        %v1537 = vadd.f32 %v962, %v1536
        %v1538 = vpop.f32.mrb[0].mxu0
        %v1539 = vpop.f32.mrb[0].mxu0
        %v1540 = vadd.f32 %v967, %v1539
        %v1541 = vpop.f32.mrb[0].mxu0
        %1542 = vmatprep.mubr.bf16.mxu0 0
        %1543 = vmatmul.mubr.bf16.gmra.mrb[0].mxu0 %v1241
        %v1544 = vpop.f32.mrb[0].mxu0
        %v1545 = vadd.f32 %v972, %v1544
        %v1546 = vpop.f32.mrb[0].mxu0
        %v1547 = vpop.f32.mrb[0].mxu0
        %v1548 = vadd.f32 %v977, %v1547
        %v1549 = vpop.f32.mrb[0].mxu0
        %1550 = vmatprep.mubr.bf16.mxu0 0
        %1551 = vmatmul.mubr.bf16.gmra.mrb[0].mxu0 %v1244
        %v1552 = vpop.f32.mrb[0].mxu0
        %v1553 = vadd.f32 %v982, %v1552
        %v1554 = vpop.f32.mrb[0].mxu0
        %v1555 = vpop.f32.mrb[0].mxu0
        %v1556 = vadd.f32 %v987, %v1555
        %v1557 = vpop.f32.mrb[0].mxu0
        %1558 = vdwg.mxu0
        %v1559 = vmax.f32 %v1305, 0.0
        %v1560 = vmax.f32 %v1308, 0.0
        %v1561 = vmax.f32 %v1313, 0.0
        %v1562 = vmax.f32 %v1316, 0.0
        %v1563 = vmax.f32 %v1321, 0.0
        %v1564 = vmax.f32 %v1324, 0.0
        %v1565 = vmax.f32 %v1329, 0.0
        %v1566 = vmax.f32 %v1332, 0.0
        %v1567 = vmax.f32 %v1337, 0.0
        %v1568 = vmax.f32 %v1340, 0.0
        %v1569 = vmax.f32 %v1345, 0.0
        %v1570 = vmax.f32 %v1348, 0.0
        %v1571 = vmax.f32 %v1353, 0.0
        %v1572 = vmax.f32 %v1356, 0.0
        %v1573 = vmax.f32 %v1361, 0.0
        %v1574 = vmax.f32 %v1364, 0.0
        %v1575 = vmax.f32 %v1369, 0.0
        %v1576 = vmax.f32 %v1372, 0.0
        %v1577 = vmax.f32 %v1377, 0.0
        %v1578 = vmax.f32 %v1380, 0.0
        %v1579 = vmax.f32 %v1385, 0.0
        %v1580 = vmax.f32 %v1388, 0.0
        %v1581 = vmax.f32 %v1393, 0.0
        %v1582 = vmax.f32 %v1396, 0.0
        %v1583 = vmax.f32 %v1401, 0.0
        %v1584 = vmax.f32 %v1404, 0.0
        %v1585 = vmax.f32 %v1409, 0.0
        %v1586 = vmax.f32 %v1412, 0.0
        %v1587 = vmax.f32 %v1417, 0.0
        %v1588 = vmax.f32 %v1420, 0.0
        %v1589 = vmax.f32 %v1425, 0.0
        %v1590 = vmax.f32 %v1428, 0.0
        %v1591 = vmax.f32 %v1433, 0.0
        %v1592 = vmax.f32 %v1436, 0.0
        %v1593 = vmax.f32 %v1441, 0.0
        %v1594 = vmax.f32 %v1444, 0.0
        %v1595 = vmax.f32 %v1449, 0.0
        %v1596 = vmax.f32 %v1452, 0.0
        %v1597 = vmax.f32 %v1457, 0.0
        %v1598 = vmax.f32 %v1460, 0.0
        %v1599 = vmax.f32 %v1465, 0.0
        %v1600 = vmax.f32 %v1468, 0.0
        %v1601 = vmax.f32 %v1473, 0.0
        %v1602 = vmax.f32 %v1476, 0.0
        %v1603 = vmax.f32 %v1481, 0.0
        %v1604 = vmax.f32 %v1484, 0.0
        %v1605 = vmax.f32 %v1489, 0.0
        %v1606 = vmax.f32 %v1492, 0.0
        %v1607 = vmax.f32 %v1497, 0.0
        %v1608 = vmax.f32 %v1500, 0.0
        %v1609 = vmax.f32 %v1505, 0.0
        %v1610 = vmax.f32 %v1508, 0.0
        %v1611 = vmax.f32 %v1513, 0.0
        %v1612 = vmax.f32 %v1516, 0.0
        %v1613 = vmax.f32 %v1521, 0.0
        %v1614 = vmax.f32 %v1524, 0.0
        %v1615 = vmax.f32 %v1529, 0.0
        %v1616 = vmax.f32 %v1532, 0.0
        %v1617 = vmax.f32 %v1537, 0.0
        %v1618 = vmax.f32 %v1540, 0.0
        %v1619 = vmax.f32 %v1545, 0.0
        %v1620 = vmax.f32 %v1548, 0.0
        %v1621 = vmax.f32 %v1553, 0.0
        %v1622 = vmax.f32 %v1556, 0.0
        %v1623 = vpack.c.bf16 %v1560, %v1559
        %v1624 = vpack.c.bf16 %v1562, %v1561
        %v1625 = vpack.c.bf16 %v1564, %v1563
        %v1626 = vpack.c.bf16 %v1566, %v1565
        %v1627 = vpack.c.bf16 %v1568, %v1567
        %v1628 = vpack.c.bf16 %v1570, %v1569
        %v1629 = vpack.c.bf16 %v1572, %v1571
        %v1630 = vpack.c.bf16 %v1574, %v1573
        %v1631 = vpack.c.bf16 %v1576, %v1575
        %v1632 = vpack.c.bf16 %v1578, %v1577
        %v1633 = vpack.c.bf16 %v1580, %v1579
        %v1634 = vpack.c.bf16 %v1582, %v1581
        %v1635 = vpack.c.bf16 %v1584, %v1583
        %v1636 = vpack.c.bf16 %v1586, %v1585
        %v1637 = vpack.c.bf16 %v1588, %v1587
        %v1638 = vpack.c.bf16 %v1590, %v1589
        %v1639 = vpack.c.bf16 %v1592, %v1591
        %v1640 = vpack.c.bf16 %v1594, %v1593
        %v1641 = vpack.c.bf16 %v1596, %v1595
        %v1642 = vpack.c.bf16 %v1598, %v1597
        %v1643 = vpack.c.bf16 %v1600, %v1599
        %v1644 = vpack.c.bf16 %v1602, %v1601
        %v1645 = vpack.c.bf16 %v1604, %v1603
        %v1646 = vpack.c.bf16 %v1606, %v1605
        %v1647 = vpack.c.bf16 %v1608, %v1607
        %v1648 = vpack.c.bf16 %v1610, %v1609
        %v1649 = vpack.c.bf16 %v1612, %v1611
        %v1650 = vpack.c.bf16 %v1614, %v1613
        %v1651 = vpack.c.bf16 %v1616, %v1615
        %v1652 = vpack.c.bf16 %v1618, %v1617
        %v1653 = vpack.c.bf16 %v1620, %v1619
        %v1654 = vpack.c.bf16 %v1622, %v1621
        %v1655 = vld [vmem:[%s3] sm:$0xff]
        %v1656 = vld [vmem:[%s3 + $0x8] sm:$0xff]
        %v1657 = vld [vmem:[%s3 + $0x10] sm:$0xff]
        %v1658 = vld [vmem:[%s3 + $0x18] sm:$0xff]
        %v1659 = vld [vmem:[%s3 + $0x20] sm:$0xff]
        %v1660 = vld [vmem:[%s3 + $0x28] sm:$0xff]
        %v1661 = vld [vmem:[%s3 + $0x30] sm:$0xff]
        %v1662 = vld [vmem:[%s3 + $0x38] sm:$0xff]
        %v1663 = vld [vmem:[%s3 + $0x40] sm:$0xff]
        %v1664 = vld [vmem:[%s3 + $0x48] sm:$0xff]
        %v1665 = vld [vmem:[%s3 + $0x50] sm:$0xff]
        %v1666 = vld [vmem:[%s3 + $0x58] sm:$0xff]
        %v1667 = vld [vmem:[%s3 + $0x60] sm:$0xff]
        %v1668 = vld [vmem:[%s3 + $0x68] sm:$0xff]
        %v1669 = vld [vmem:[%s3 + $0x70] sm:$0xff]
        %v1670 = vld [vmem:[%s3 + $0x78] sm:$0xff]
        %v1671 = vld [vmem:[%s3 + $0x80] sm:$0xff]
        %v1672 = vld [vmem:[%s3 + $0x88] sm:$0xff]
        %v1673 = vld [vmem:[%s3 + $0x90] sm:$0xff]
        %v1674 = vld [vmem:[%s3 + $0x98] sm:$0xff]
        %v1675 = vld [vmem:[%s3 + $0xa0] sm:$0xff]
        %v1676 = vld [vmem:[%s3 + $0xa8] sm:$0xff]
        %v1677 = vld [vmem:[%s3 + $0xb0] sm:$0xff]
        %v1678 = vld [vmem:[%s3 + $0xb8] sm:$0xff]
        %v1679 = vld [vmem:[%s3 + $0xc0] sm:$0xff]
        %v1680 = vld [vmem:[%s3 + $0xc8] sm:$0xff]
        %v1681 = vld [vmem:[%s3 + $0xd0] sm:$0xff]
        %v1682 = vld [vmem:[%s3 + $0xd8] sm:$0xff]
        %v1683 = vld [vmem:[%s3 + $0xe0] sm:$0xff]
        %v1684 = vld [vmem:[%s3 + $0xe8] sm:$0xff]
        %v1685 = vld [vmem:[%s3 + $0xf0] sm:$0xff]
        %v1686 = vld [vmem:[%s3 + $0xf8] sm:$0xff]
        %v1687 = vld [vmem:[%s3 + $0x100] sm:$0xff]
        %v1688 = vld [vmem:[%s3 + $0x108] sm:$0xff]
        %v1689 = vld [vmem:[%s3 + $0x110] sm:$0xff]
        %v1690 = vld [vmem:[%s3 + $0x118] sm:$0xff]
        %v1691 = vld [vmem:[%s3 + $0x120] sm:$0xff]
        %v1692 = vld [vmem:[%s3 + $0x128] sm:$0xff]
        %v1693 = vld [vmem:[%s3 + $0x130] sm:$0xff]
        %v1694 = vld [vmem:[%s3 + $0x138] sm:$0xff]
        %v1695 = vld [vmem:[%s3 + $0x140] sm:$0xff]
        %v1696 = vld [vmem:[%s3 + $0x148] sm:$0xff]
        %v1697 = vld [vmem:[%s3 + $0x150] sm:$0xff]
        %v1698 = vld [vmem:[%s3 + $0x158] sm:$0xff]
        %v1699 = vld [vmem:[%s3 + $0x160] sm:$0xff]
        %v1700 = vld [vmem:[%s3 + $0x168] sm:$0xff]
        %v1701 = vld [vmem:[%s3 + $0x170] sm:$0xff]
        %v1702 = vld [vmem:[%s3 + $0x178] sm:$0xff]
        %v1703 = vld [vmem:[%s3 + $0x180] sm:$0xff]
        %v1704 = vld [vmem:[%s3 + $0x188] sm:$0xff]
        %v1705 = vld [vmem:[%s3 + $0x190] sm:$0xff]
        %v1706 = vld [vmem:[%s3 + $0x198] sm:$0xff]
        %v1707 = vld [vmem:[%s3 + $0x1a0] sm:$0xff]
        %v1708 = vld [vmem:[%s3 + $0x1a8] sm:$0xff]
        %v1709 = vld [vmem:[%s3 + $0x1b0] sm:$0xff]
        %v1710 = vld [vmem:[%s3 + $0x1b8] sm:$0xff]
        %v1711 = vld [vmem:[%s3 + $0x1c0] sm:$0xff]
        %v1712 = vld [vmem:[%s3 + $0x1c8] sm:$0xff]
        %v1713 = vld [vmem:[%s3 + $0x1d0] sm:$0xff]
        %v1714 = vld [vmem:[%s3 + $0x1d8] sm:$0xff]
        %v1715 = vld [vmem:[%s3 + $0x1e0] sm:$0xff]
        %v1716 = vld [vmem:[%s3 + $0x1e8] sm:$0xff]
        %v1717 = vld [vmem:[%s3 + $0x1f0] sm:$0xff]
        %v1718 = vld [vmem:[%s3 + $0x1f8] sm:$0xff]
        %v1719 = vld [vmem:[%s4] sm:$0xff]
        %v1720 = vld [vmem:[%s4 + $0x8] sm:$0xff]
        %v1721 = vld [vmem:[%s4 + $0x10] sm:$0xff]
        %v1722 = vld [vmem:[%s4 + $0x18] sm:$0xff]
        %v1723 = vld [vmem:[%s4 + $0x20] sm:$0xff]
        %v1724 = vld [vmem:[%s4 + $0x28] sm:$0xff]
        %v1725 = vld [vmem:[%s4 + $0x30] sm:$0xff]
        %v1726 = vld [vmem:[%s4 + $0x38] sm:$0xff]
        %v1727 = vld [vmem:[%s4 + $0x40] sm:$0xff]
        %v1728 = vld [vmem:[%s4 + $0x48] sm:$0xff]
        %v1729 = vld [vmem:[%s4 + $0x50] sm:$0xff]
        %v1730 = vld [vmem:[%s4 + $0x58] sm:$0xff]
        %v1731 = vld [vmem:[%s4 + $0x60] sm:$0xff]
        %v1732 = vld [vmem:[%s4 + $0x68] sm:$0xff]
        %v1733 = vld [vmem:[%s4 + $0x70] sm:$0xff]
        %v1734 = vld [vmem:[%s4 + $0x78] sm:$0xff]
        %v1735 = vld [vmem:[%s4 + $0x80] sm:$0xff]
        %v1736 = vld [vmem:[%s4 + $0x88] sm:$0xff]
        %v1737 = vld [vmem:[%s4 + $0x90] sm:$0xff]
        %v1738 = vld [vmem:[%s4 + $0x98] sm:$0xff]
        %v1739 = vld [vmem:[%s4 + $0xa0] sm:$0xff]
        %v1740 = vld [vmem:[%s4 + $0xa8] sm:$0xff]
        %v1741 = vld [vmem:[%s4 + $0xb0] sm:$0xff]
        %v1742 = vld [vmem:[%s4 + $0xb8] sm:$0xff]
        %v1743 = vld [vmem:[%s4 + $0xc0] sm:$0xff]
        %v1744 = vld [vmem:[%s4 + $0xc8] sm:$0xff]
        %v1745 = vld [vmem:[%s4 + $0xd0] sm:$0xff]
        %v1746 = vld [vmem:[%s4 + $0xd8] sm:$0xff]
        %v1747 = vld [vmem:[%s4 + $0xe0] sm:$0xff]
        %v1748 = vld [vmem:[%s4 + $0xe8] sm:$0xff]
        %v1749 = vld [vmem:[%s4 + $0xf0] sm:$0xff]
        %v1750 = vld [vmem:[%s4 + $0xf8] sm:$0xff]
        %1752 = vset.pattern.permute.xlu0 0
        %1753 = vperm.xlu0 %1752, %v1719
        %v1754 = vpop.permute.xlu0 %1753
        %1757 = vset.pattern.permute.xlu0 0
        %1758 = vperm.xlu0 %1757, %v1720
        %v1759 = vpop.permute.xlu0 %1758
        %1762 = vset.pattern.permute.xlu0 0
        %1763 = vperm.xlu0 %1762, %v1721
        %v1764 = vpop.permute.xlu0 %1763
        %1767 = vset.pattern.permute.xlu0 0
        %1768 = vperm.xlu0 %1767, %v1722
        %v1769 = vpop.permute.xlu0 %1768
        %1772 = vset.pattern.permute.xlu0 0
        %1773 = vperm.xlu0 %1772, %v1723
        %v1774 = vpop.permute.xlu0 %1773
        %1777 = vset.pattern.permute.xlu0 0
        %1778 = vperm.xlu0 %1777, %v1724
        %v1779 = vpop.permute.xlu0 %1778
        %1782 = vset.pattern.permute.xlu0 0
        %1783 = vperm.xlu0 %1782, %v1725
        %v1784 = vpop.permute.xlu0 %1783
        %1787 = vset.pattern.permute.xlu0 0
        %1788 = vperm.xlu0 %1787, %v1726
        %v1789 = vpop.permute.xlu0 %1788
        %1792 = vset.pattern.permute.xlu0 0
        %1793 = vperm.xlu0 %1792, %v1727
        %v1794 = vpop.permute.xlu0 %1793
        %1797 = vset.pattern.permute.xlu0 0
        %1798 = vperm.xlu0 %1797, %v1728
        %v1799 = vpop.permute.xlu0 %1798
        %1802 = vset.pattern.permute.xlu0 0
        %1803 = vperm.xlu0 %1802, %v1729
        %v1804 = vpop.permute.xlu0 %1803
        %1807 = vset.pattern.permute.xlu0 0
        %1808 = vperm.xlu0 %1807, %v1730
        %v1809 = vpop.permute.xlu0 %1808
        %1812 = vset.pattern.permute.xlu0 0
        %1813 = vperm.xlu0 %1812, %v1731
        %v1814 = vpop.permute.xlu0 %1813
        %1817 = vset.pattern.permute.xlu0 0
        %1818 = vperm.xlu0 %1817, %v1732
        %v1819 = vpop.permute.xlu0 %1818
        %1822 = vset.pattern.permute.xlu0 0
        %1823 = vperm.xlu0 %1822, %v1733
        %v1824 = vpop.permute.xlu0 %1823
        %1827 = vset.pattern.permute.xlu0 0
        %1828 = vperm.xlu0 %1827, %v1734
        %v1829 = vpop.permute.xlu0 %1828
        %1832 = vset.pattern.permute.xlu0 0
        %1833 = vperm.xlu0 %1832, %v1735
        %v1834 = vpop.permute.xlu0 %1833
        %1837 = vset.pattern.permute.xlu0 0
        %1838 = vperm.xlu0 %1837, %v1736
        %v1839 = vpop.permute.xlu0 %1838
        %1842 = vset.pattern.permute.xlu0 0
        %1843 = vperm.xlu0 %1842, %v1737
        %v1844 = vpop.permute.xlu0 %1843
        %1847 = vset.pattern.permute.xlu0 0
        %1848 = vperm.xlu0 %1847, %v1738
        %v1849 = vpop.permute.xlu0 %1848
        %1852 = vset.pattern.permute.xlu0 0
        %1853 = vperm.xlu0 %1852, %v1739
        %v1854 = vpop.permute.xlu0 %1853
        %1857 = vset.pattern.permute.xlu0 0
        %1858 = vperm.xlu0 %1857, %v1740
        %v1859 = vpop.permute.xlu0 %1858
        %1862 = vset.pattern.permute.xlu0 0
        %1863 = vperm.xlu0 %1862, %v1741
        %v1864 = vpop.permute.xlu0 %1863
        %1867 = vset.pattern.permute.xlu0 0
        %1868 = vperm.xlu0 %1867, %v1742
        %v1869 = vpop.permute.xlu0 %1868
        %1872 = vset.pattern.permute.xlu0 0
        %1873 = vperm.xlu0 %1872, %v1743
        %v1874 = vpop.permute.xlu0 %1873
        %1877 = vset.pattern.permute.xlu0 0
        %1878 = vperm.xlu0 %1877, %v1744
        %v1879 = vpop.permute.xlu0 %1878
        %1882 = vset.pattern.permute.xlu0 0
        %1883 = vperm.xlu0 %1882, %v1745
        %v1884 = vpop.permute.xlu0 %1883
        %1887 = vset.pattern.permute.xlu0 0
        %1888 = vperm.xlu0 %1887, %v1746
        %v1889 = vpop.permute.xlu0 %1888
        %1892 = vset.pattern.permute.xlu0 0
        %1893 = vperm.xlu0 %1892, %v1747
        %v1894 = vpop.permute.xlu0 %1893
        %1897 = vset.pattern.permute.xlu0 0
        %1898 = vperm.xlu0 %1897, %v1748
        %v1899 = vpop.permute.xlu0 %1898
        %1902 = vset.pattern.permute.xlu0 0
        %1903 = vperm.xlu0 %1902, %v1749
        %v1904 = vpop.permute.xlu0 %1903
        %1907 = vset.pattern.permute.xlu0 0
        %1908 = vperm.xlu0 %1907, %v1750
        %v1909 = vpop.permute.xlu0 %1908
        %v1975 = vunpack.c.l.b16 %v1655
        %v1976 = vunpack.c.h.b16 %v1655
        %v1977 = vunpack.c.l.b16 %v1656
        %v1978 = vunpack.c.h.b16 %v1656
        %v1979 = vunpack.c.l.b16 %v1657
        %v1980 = vunpack.c.h.b16 %v1657
        %v1981 = vunpack.c.l.b16 %v1658
        %v1982 = vunpack.c.h.b16 %v1658
        %v1983 = vunpack.c.l.b16 %v1659
        %v1984 = vunpack.c.h.b16 %v1659
        %v1985 = vunpack.c.l.b16 %v1660
        %v1986 = vunpack.c.h.b16 %v1660
        %v1987 = vunpack.c.l.b16 %v1661
        %v1988 = vunpack.c.h.b16 %v1661
        %v1989 = vunpack.c.l.b16 %v1662
        %v1990 = vunpack.c.h.b16 %v1662
        %v1991 = vunpack.c.l.b16 %v1663
        %v1992 = vunpack.c.h.b16 %v1663
        %v1993 = vunpack.c.l.b16 %v1664
        %v1994 = vunpack.c.h.b16 %v1664
        %v1995 = vunpack.c.l.b16 %v1665
        %v1996 = vunpack.c.h.b16 %v1665
        %v1997 = vunpack.c.l.b16 %v1666
        %v1998 = vunpack.c.h.b16 %v1666
        %v1999 = vunpack.c.l.b16 %v1667
        %v2000 = vunpack.c.h.b16 %v1667
        %v2001 = vunpack.c.l.b16 %v1668
        %v2002 = vunpack.c.h.b16 %v1668
        %v2003 = vunpack.c.l.b16 %v1669
        %v2004 = vunpack.c.h.b16 %v1669
        %v2005 = vunpack.c.l.b16 %v1670
        %v2006 = vunpack.c.h.b16 %v1670
        %v2007 = vunpack.c.l.b16 %v1671
        %v2008 = vunpack.c.h.b16 %v1671
        %v2009 = vunpack.c.l.b16 %v1672
        %v2010 = vunpack.c.h.b16 %v1672
        %v2011 = vunpack.c.l.b16 %v1673
        %v2012 = vunpack.c.h.b16 %v1673
        %v2013 = vunpack.c.l.b16 %v1674
        %v2014 = vunpack.c.h.b16 %v1674
        %v2015 = vunpack.c.l.b16 %v1675
        %v2016 = vunpack.c.h.b16 %v1675
        %v2017 = vunpack.c.l.b16 %v1676
        %v2018 = vunpack.c.h.b16 %v1676
        %v2019 = vunpack.c.l.b16 %v1677
        %v2020 = vunpack.c.h.b16 %v1677
        %v2021 = vunpack.c.l.b16 %v1678
        %v2022 = vunpack.c.h.b16 %v1678
        %v2023 = vunpack.c.l.b16 %v1679
        %v2024 = vunpack.c.h.b16 %v1679
        %v2025 = vunpack.c.l.b16 %v1680
        %v2026 = vunpack.c.h.b16 %v1680
        %v2027 = vunpack.c.l.b16 %v1681
        %v2028 = vunpack.c.h.b16 %v1681
        %v2029 = vunpack.c.l.b16 %v1682
        %v2030 = vunpack.c.h.b16 %v1682
        %v2031 = vunpack.c.l.b16 %v1683
        %v2032 = vunpack.c.h.b16 %v1683
        %v2033 = vunpack.c.l.b16 %v1684
        %v2034 = vunpack.c.h.b16 %v1684
        %v2035 = vunpack.c.l.b16 %v1685
        %v2036 = vunpack.c.h.b16 %v1685
        %v2037 = vunpack.c.l.b16 %v1686
        %v2038 = vunpack.c.h.b16 %v1686
        %v2039 = vunpack.c.l.b16 %v1687
        %v2040 = vunpack.c.h.b16 %v1687
        %v2041 = vunpack.c.l.b16 %v1688
        %v2042 = vunpack.c.h.b16 %v1688
        %v2043 = vunpack.c.l.b16 %v1689
        %v2044 = vunpack.c.h.b16 %v1689
        %v2045 = vunpack.c.l.b16 %v1690
        %v2046 = vunpack.c.h.b16 %v1690
        %v2047 = vunpack.c.l.b16 %v1691
        %v2048 = vunpack.c.h.b16 %v1691
        %v2049 = vunpack.c.l.b16 %v1692
        %v2050 = vunpack.c.h.b16 %v1692
        %v2051 = vunpack.c.l.b16 %v1693
        %v2052 = vunpack.c.h.b16 %v1693
        %v2053 = vunpack.c.l.b16 %v1694
        %v2054 = vunpack.c.h.b16 %v1694
        %v2055 = vunpack.c.l.b16 %v1695
        %v2056 = vunpack.c.h.b16 %v1695
        %v2057 = vunpack.c.l.b16 %v1696
        %v2058 = vunpack.c.h.b16 %v1696
        %v2059 = vunpack.c.l.b16 %v1697
        %v2060 = vunpack.c.h.b16 %v1697
        %v2061 = vunpack.c.l.b16 %v1698
        %v2062 = vunpack.c.h.b16 %v1698
        %v2063 = vunpack.c.l.b16 %v1699
        %v2064 = vunpack.c.h.b16 %v1699
        %v2065 = vunpack.c.l.b16 %v1700
        %v2066 = vunpack.c.h.b16 %v1700
        %v2067 = vunpack.c.l.b16 %v1701
        %v2068 = vunpack.c.h.b16 %v1701
        %v2069 = vunpack.c.l.b16 %v1702
        %v2070 = vunpack.c.h.b16 %v1702
        %v2071 = vunpack.c.l.b16 %v1703
        %v2072 = vunpack.c.h.b16 %v1703
        %v2073 = vunpack.c.l.b16 %v1704
        %v2074 = vunpack.c.h.b16 %v1704
        %v2075 = vunpack.c.l.b16 %v1705
        %v2076 = vunpack.c.h.b16 %v1705
        %v2077 = vunpack.c.l.b16 %v1706
        %v2078 = vunpack.c.h.b16 %v1706
        %v2079 = vunpack.c.l.b16 %v1707
        %v2080 = vunpack.c.h.b16 %v1707
        %v2081 = vunpack.c.l.b16 %v1708
        %v2082 = vunpack.c.h.b16 %v1708
        %v2083 = vunpack.c.l.b16 %v1709
        %v2084 = vunpack.c.h.b16 %v1709
        %v2085 = vunpack.c.l.b16 %v1710
        %v2086 = vunpack.c.h.b16 %v1710
        %v2087 = vunpack.c.l.b16 %v1711
        %v2088 = vunpack.c.h.b16 %v1711
        %v2089 = vunpack.c.l.b16 %v1712
        %v2090 = vunpack.c.h.b16 %v1712
        %v2091 = vunpack.c.l.b16 %v1713
        %v2092 = vunpack.c.h.b16 %v1713
        %v2093 = vunpack.c.l.b16 %v1714
        %v2094 = vunpack.c.h.b16 %v1714
        %v2095 = vunpack.c.l.b16 %v1715
        %v2096 = vunpack.c.h.b16 %v1715
        %v2097 = vunpack.c.l.b16 %v1716
        %v2098 = vunpack.c.h.b16 %v1716
        %v2099 = vunpack.c.l.b16 %v1717
        %v2100 = vunpack.c.h.b16 %v1717
        %v2101 = vunpack.c.l.b16 %v1718
        %v2102 = vunpack.c.h.b16 %v1718
        %v2103 = vpack.c.b16 %v1979, %v1975
        %v2104 = vpack.c.b16 %v1980, %v1976
        %v2105 = vpack.c.b16 %v1981, %v1977
        %v2106 = vpack.c.b16 %v1982, %v1978
        %v2107 = vpack.c.b16 %v1987, %v1983
        %v2108 = vpack.c.b16 %v1988, %v1984
        %v2109 = vpack.c.b16 %v1989, %v1985
        %v2110 = vpack.c.b16 %v1990, %v1986
        %v2111 = vpack.c.b16 %v1995, %v1991
        %v2112 = vpack.c.b16 %v1996, %v1992
        %v2113 = vpack.c.b16 %v1997, %v1993
        %v2114 = vpack.c.b16 %v1998, %v1994
        %v2115 = vpack.c.b16 %v2003, %v1999
        %v2116 = vpack.c.b16 %v2004, %v2000
        %v2117 = vpack.c.b16 %v2005, %v2001
        %v2118 = vpack.c.b16 %v2006, %v2002
        %v2119 = vpack.c.b16 %v2011, %v2007
        %v2120 = vpack.c.b16 %v2012, %v2008
        %v2121 = vpack.c.b16 %v2013, %v2009
        %v2122 = vpack.c.b16 %v2014, %v2010
        %v2123 = vpack.c.b16 %v2019, %v2015
        %v2124 = vpack.c.b16 %v2020, %v2016
        %v2125 = vpack.c.b16 %v2021, %v2017
        %v2126 = vpack.c.b16 %v2022, %v2018
        %v2127 = vpack.c.b16 %v2027, %v2023
        %v2128 = vpack.c.b16 %v2028, %v2024
        %v2129 = vpack.c.b16 %v2029, %v2025
        %v2130 = vpack.c.b16 %v2030, %v2026
        %v2131 = vpack.c.b16 %v2035, %v2031
        %v2132 = vpack.c.b16 %v2036, %v2032
        %v2133 = vpack.c.b16 %v2037, %v2033
        %v2134 = vpack.c.b16 %v2038, %v2034
        %v2135 = vpack.c.b16 %v2043, %v2039
        %v2136 = vpack.c.b16 %v2044, %v2040
        %v2137 = vpack.c.b16 %v2045, %v2041
        %v2138 = vpack.c.b16 %v2046, %v2042
        %v2139 = vpack.c.b16 %v2051, %v2047
        %v2140 = vpack.c.b16 %v2052, %v2048
        %v2141 = vpack.c.b16 %v2053, %v2049
        %v2142 = vpack.c.b16 %v2054, %v2050
        %v2143 = vpack.c.b16 %v2059, %v2055
        %v2144 = vpack.c.b16 %v2060, %v2056
        %v2145 = vpack.c.b16 %v2061, %v2057
        %v2146 = vpack.c.b16 %v2062, %v2058
        %v2147 = vpack.c.b16 %v2067, %v2063
        %v2148 = vpack.c.b16 %v2068, %v2064
        %v2149 = vpack.c.b16 %v2069, %v2065
        %v2150 = vpack.c.b16 %v2070, %v2066
        %v2151 = vpack.c.b16 %v2075, %v2071
        %v2152 = vpack.c.b16 %v2076, %v2072
        %v2153 = vpack.c.b16 %v2077, %v2073
        %v2154 = vpack.c.b16 %v2078, %v2074
        %v2155 = vpack.c.b16 %v2083, %v2079
        %v2156 = vpack.c.b16 %v2084, %v2080
        %v2157 = vpack.c.b16 %v2085, %v2081
        %v2158 = vpack.c.b16 %v2086, %v2082
        %v2159 = vpack.c.b16 %v2091, %v2087
        %v2160 = vpack.c.b16 %v2092, %v2088
        %v2161 = vpack.c.b16 %v2093, %v2089
        %v2162 = vpack.c.b16 %v2094, %v2090
        %v2163 = vpack.c.b16 %v2099, %v2095
        %v2164 = vpack.c.b16 %v2100, %v2096
        %v2165 = vpack.c.b16 %v2101, %v2097
        %v2166 = vpack.c.b16 %v2102, %v2098
        %2231 = vmatprep.subr.bf16.mxu0 0
        %2232 = vmatpush1.bf16.msra.mxu0 %v1623
        %2233 = vmatprep.subr.bf16.mxu0 0
        %2234 = vmatpush1.bf16.msra.mxu0 %v1624
        %2235 = vmatprep.subr.bf16.mxu0 0
        %2236 = vmatpush1.bf16.msra.mxu0 %v1625
        %2237 = vmatprep.subr.bf16.mxu0 0
        %2238 = vmatpush1.bf16.msra.mxu0 %v1626
        %2239 = vmatprep.subr.bf16.mxu0 0
        %2240 = vmatpush1.bf16.msra.mxu0 %v1627
        %2241 = vmatprep.subr.bf16.mxu0 0
        %2242 = vmatpush1.bf16.msra.mxu0 %v1628
        %2243 = vmatprep.subr.bf16.mxu0 0
        %2244 = vmatpush1.bf16.msra.mxu0 %v1629
        %2245 = vmatprep.subr.bf16.mxu0 0
        %2246 = vmatpush1.bf16.msra.mxu0 %v1630
        %2247 = vmatprep.subr.bf16.mxu0 0
        %2248 = vmatpush1.bf16.msra.mxu0 %v1631
        %2249 = vmatprep.subr.bf16.mxu0 0
        %2250 = vmatpush1.bf16.msra.mxu0 %v1632
        %2251 = vmatprep.subr.bf16.mxu0 0
        %2252 = vmatpush1.bf16.msra.mxu0 %v1633
        %2253 = vmatprep.subr.bf16.mxu0 0
        %2254 = vmatpush1.bf16.msra.mxu0 %v1634
        %2255 = vmatprep.subr.bf16.mxu0 0
        %2256 = vmatpush1.bf16.msra.mxu0 %v1635
        %2257 = vmatprep.subr.bf16.mxu0 0
        %2258 = vmatpush1.bf16.msra.mxu0 %v1636
        %2259 = vmatprep.subr.bf16.mxu0 0
        %2260 = vmatpush1.bf16.msra.mxu0 %v1637
        %2261 = vmatprep.subr.bf16.mxu0 0
        %2262 = vmatpush1.bf16.msra.mxu0 %v1638
        %2263 = vmatprep.mubr.bf16.mxu0 %v2104
        %2264 = vmatmul.mubr.bf16.gmra.mrb[0].mxu0 %v2103
        %v2265 = vpop.f32.mrb[0].mxu0
        %v2266 = vadd.f32 %v1754, %v2265
        %v2267 = vpop.f32.mrb[0].mxu0
        %v2268 = vpop.f32.mrb[0].mxu0
        %v2269 = vadd.f32 %v1759, %v2268
        %v2270 = vpop.f32.mrb[0].mxu0
        %2271 = vmatprep.mubr.bf16.mxu0 %v2108
        %2272 = vmatmul.mubr.bf16.gmra.mrb[0].mxu0 %v2107
        %v2273 = vpop.f32.mrb[0].mxu0
        %v2274 = vadd.f32 %v1764, %v2273
        %v2275 = vpop.f32.mrb[0].mxu0
        %v2276 = vpop.f32.mrb[0].mxu0
        %v2277 = vadd.f32 %v1769, %v2276
        %v2278 = vpop.f32.mrb[0].mxu0
        %2279 = vmatprep.mubr.bf16.mxu0 %v2112
        %2280 = vmatmul.mubr.bf16.gmra.mrb[0].mxu0 %v2111
        %v2281 = vpop.f32.mrb[0].mxu0
        %v2282 = vadd.f32 %v1774, %v2281
        %v2283 = vpop.f32.mrb[0].mxu0
        %v2284 = vpop.f32.mrb[0].mxu0
        %v2285 = vadd.f32 %v1779, %v2284
        %v2286 = vpop.f32.mrb[0].mxu0
        %2287 = vmatprep.mubr.bf16.mxu0 %v2116
        %2288 = vmatmul.mubr.bf16.gmra.mrb[0].mxu0 %v2115
        %v2289 = vpop.f32.mrb[0].mxu0
        %v2290 = vadd.f32 %v1784, %v2289
        %v2291 = vpop.f32.mrb[0].mxu0
        %v2292 = vpop.f32.mrb[0].mxu0
        %v2293 = vadd.f32 %v1789, %v2292
        %v2294 = vpop.f32.mrb[0].mxu0
        %2295 = vmatprep.mubr.bf16.mxu0 %v2120
        %2296 = vmatmul.mubr.bf16.gmra.mrb[0].mxu0 %v2119
        %v2297 = vpop.f32.mrb[0].mxu0
        %v2298 = vadd.f32 %v1794, %v2297
        %v2299 = vpop.f32.mrb[0].mxu0
        %v2300 = vpop.f32.mrb[0].mxu0
        %v2301 = vadd.f32 %v1799, %v2300
        %v2302 = vpop.f32.mrb[0].mxu0
        %2303 = vmatprep.mubr.bf16.mxu0 %v2124
        %2304 = vmatmul.mubr.bf16.gmra.mrb[0].mxu0 %v2123
        %v2305 = vpop.f32.mrb[0].mxu0
        %v2306 = vadd.f32 %v1804, %v2305
        %v2307 = vpop.f32.mrb[0].mxu0
        %v2308 = vpop.f32.mrb[0].mxu0
        %v2309 = vadd.f32 %v1809, %v2308
        %v2310 = vpop.f32.mrb[0].mxu0
        %2311 = vmatprep.mubr.bf16.mxu0 %v2128
        %2312 = vmatmul.mubr.bf16.gmra.mrb[0].mxu0 %v2127
        %v2313 = vpop.f32.mrb[0].mxu0
        %v2314 = vadd.f32 %v1814, %v2313
        %v2315 = vpop.f32.mrb[0].mxu0
        %v2316 = vpop.f32.mrb[0].mxu0
        %v2317 = vadd.f32 %v1819, %v2316
        %v2318 = vpop.f32.mrb[0].mxu0
        %2319 = vmatprep.mubr.bf16.mxu0 %v2132
        %2320 = vmatmul.mubr.bf16.gmra.mrb[0].mxu0 %v2131
        %v2321 = vpop.f32.mrb[0].mxu0
        %v2322 = vadd.f32 %v1824, %v2321
        %v2323 = vpop.f32.mrb[0].mxu0
        %v2324 = vpop.f32.mrb[0].mxu0
        %v2325 = vadd.f32 %v1829, %v2324
        %v2326 = vpop.f32.mrb[0].mxu0
        %2327 = vmatprep.mubr.bf16.mxu0 %v2136
        %2328 = vmatmul.mubr.bf16.gmra.mrb[0].mxu0 %v2135
        %v2329 = vpop.f32.mrb[0].mxu0
        %v2330 = vadd.f32 %v1834, %v2329
        %v2331 = vpop.f32.mrb[0].mxu0
        %v2332 = vpop.f32.mrb[0].mxu0
        %v2333 = vadd.f32 %v1839, %v2332
        %v2334 = vpop.f32.mrb[0].mxu0
        %2335 = vmatprep.mubr.bf16.mxu0 %v2140
        %2336 = vmatmul.mubr.bf16.gmra.mrb[0].mxu0 %v2139
        %v2337 = vpop.f32.mrb[0].mxu0
        %v2338 = vadd.f32 %v1844, %v2337
        %v2339 = vpop.f32.mrb[0].mxu0
        %v2340 = vpop.f32.mrb[0].mxu0
        %v2341 = vadd.f32 %v1849, %v2340
        %v2342 = vpop.f32.mrb[0].mxu0
        %2343 = vmatprep.mubr.bf16.mxu0 %v2144
        %2344 = vmatmul.mubr.bf16.gmra.mrb[0].mxu0 %v2143
        %v2345 = vpop.f32.mrb[0].mxu0
        %v2346 = vadd.f32 %v1854, %v2345
        %v2347 = vpop.f32.mrb[0].mxu0
        %v2348 = vpop.f32.mrb[0].mxu0
        %v2349 = vadd.f32 %v1859, %v2348
        %v2350 = vpop.f32.mrb[0].mxu0
        %2351 = vmatprep.mubr.bf16.mxu0 %v2148
        %2352 = vmatmul.mubr.bf16.gmra.mrb[0].mxu0 %v2147
        %v2353 = vpop.f32.mrb[0].mxu0
        %v2354 = vadd.f32 %v1864, %v2353
        %v2355 = vpop.f32.mrb[0].mxu0
        %v2356 = vpop.f32.mrb[0].mxu0
        %v2357 = vadd.f32 %v1869, %v2356
        %v2358 = vpop.f32.mrb[0].mxu0
        %2359 = vmatprep.mubr.bf16.mxu0 %v2152
        %2360 = vmatmul.mubr.bf16.gmra.mrb[0].mxu0 %v2151
        %v2361 = vpop.f32.mrb[0].mxu0
        %v2362 = vadd.f32 %v1874, %v2361
        %v2363 = vpop.f32.mrb[0].mxu0
        %v2364 = vpop.f32.mrb[0].mxu0
        %v2365 = vadd.f32 %v1879, %v2364
        %v2366 = vpop.f32.mrb[0].mxu0
        %2367 = vmatprep.mubr.bf16.mxu0 %v2156
        %2368 = vmatmul.mubr.bf16.gmra.mrb[0].mxu0 %v2155
        %v2369 = vpop.f32.mrb[0].mxu0
        %v2370 = vadd.f32 %v1884, %v2369
        %v2371 = vpop.f32.mrb[0].mxu0
        %v2372 = vpop.f32.mrb[0].mxu0
        %v2373 = vadd.f32 %v1889, %v2372
        %v2374 = vpop.f32.mrb[0].mxu0
        %2375 = vmatprep.mubr.bf16.mxu0 %v2160
        %2376 = vmatmul.mubr.bf16.gmra.mrb[0].mxu0 %v2159
        %v2377 = vpop.f32.mrb[0].mxu0
        %v2378 = vadd.f32 %v1894, %v2377
        %v2379 = vpop.f32.mrb[0].mxu0
        %v2380 = vpop.f32.mrb[0].mxu0
        %v2381 = vadd.f32 %v1899, %v2380
        %v2382 = vpop.f32.mrb[0].mxu0
        %2383 = vmatprep.mubr.bf16.mxu0 %v2164
        %2384 = vmatmul.mubr.bf16.gmra.mrb[0].mxu0 %v2163
        %v2385 = vpop.f32.mrb[0].mxu0
        %v2386 = vadd.f32 %v1904, %v2385
        %v2387 = vpop.f32.mrb[0].mxu0
        %v2388 = vpop.f32.mrb[0].mxu0
        %v2389 = vadd.f32 %v1909, %v2388
        %v2390 = vpop.f32.mrb[0].mxu0
        %2391 = vdwg.mxu0
        %2392 = vmatprep.subr.bf16.mxu0 0
        %2393 = vmatpush1.bf16.msra.mxu0 %v1639
        %2394 = vmatprep.subr.bf16.mxu0 0
        %2395 = vmatpush1.bf16.msra.mxu0 %v1640
        %2396 = vmatprep.subr.bf16.mxu0 0
        %2397 = vmatpush1.bf16.msra.mxu0 %v1641
        %2398 = vmatprep.subr.bf16.mxu0 0
        %2399 = vmatpush1.bf16.msra.mxu0 %v1642
        %2400 = vmatprep.subr.bf16.mxu0 0
        %2401 = vmatpush1.bf16.msra.mxu0 %v1643
        %2402 = vmatprep.subr.bf16.mxu0 0
        %2403 = vmatpush1.bf16.msra.mxu0 %v1644
        %2404 = vmatprep.subr.bf16.mxu0 0
        %2405 = vmatpush1.bf16.msra.mxu0 %v1645
        %2406 = vmatprep.subr.bf16.mxu0 0
        %2407 = vmatpush1.bf16.msra.mxu0 %v1646
        %2408 = vmatprep.subr.bf16.mxu0 0
        %2409 = vmatpush1.bf16.msra.mxu0 %v1647
        %2410 = vmatprep.subr.bf16.mxu0 0
        %2411 = vmatpush1.bf16.msra.mxu0 %v1648
        %2412 = vmatprep.subr.bf16.mxu0 0
        %2413 = vmatpush1.bf16.msra.mxu0 %v1649
        %2414 = vmatprep.subr.bf16.mxu0 0
        %2415 = vmatpush1.bf16.msra.mxu0 %v1650
        %2416 = vmatprep.subr.bf16.mxu0 0
        %2417 = vmatpush1.bf16.msra.mxu0 %v1651
        %2418 = vmatprep.subr.bf16.mxu0 0
        %2419 = vmatpush1.bf16.msra.mxu0 %v1652
        %2420 = vmatprep.subr.bf16.mxu0 0
        %2421 = vmatpush1.bf16.msra.mxu0 %v1653
        %2422 = vmatprep.subr.bf16.mxu0 0
        %2423 = vmatpush1.bf16.msra.mxu0 %v1654
        %2424 = vmatprep.mubr.bf16.mxu0 %v2106
        %2425 = vmatmul.mubr.bf16.gmra.mrb[0].mxu0 %v2105
        %v2426 = vpop.f32.mrb[0].mxu0
        %v2427 = vadd.f32 %v2266, %v2426
        %v2428 = vpop.f32.mrb[0].mxu0
        %v2429 = vpop.f32.mrb[0].mxu0
        %v2430 = vadd.f32 %v2269, %v2429
        %v2431 = vpop.f32.mrb[0].mxu0
        %2432 = vmatprep.mubr.bf16.mxu0 %v2110
        %2433 = vmatmul.mubr.bf16.gmra.mrb[0].mxu0 %v2109
        %v2434 = vpop.f32.mrb[0].mxu0
        %v2435 = vadd.f32 %v2274, %v2434
        %v2436 = vpop.f32.mrb[0].mxu0
        %v2437 = vpop.f32.mrb[0].mxu0
        %v2438 = vadd.f32 %v2277, %v2437
        %v2439 = vpop.f32.mrb[0].mxu0
        %2440 = vmatprep.mubr.bf16.mxu0 %v2114
        %2441 = vmatmul.mubr.bf16.gmra.mrb[0].mxu0 %v2113
        %v2442 = vpop.f32.mrb[0].mxu0
        %v2443 = vadd.f32 %v2282, %v2442
        %v2444 = vpop.f32.mrb[0].mxu0
        %v2445 = vpop.f32.mrb[0].mxu0
        %v2446 = vadd.f32 %v2285, %v2445
        %v2447 = vpop.f32.mrb[0].mxu0
        %2448 = vmatprep.mubr.bf16.mxu0 %v2118
        %2449 = vmatmul.mubr.bf16.gmra.mrb[0].mxu0 %v2117
        %v2450 = vpop.f32.mrb[0].mxu0
        %v2451 = vadd.f32 %v2290, %v2450
        %v2452 = vpop.f32.mrb[0].mxu0
        %v2453 = vpop.f32.mrb[0].mxu0
        %v2454 = vadd.f32 %v2293, %v2453
        %v2455 = vpop.f32.mrb[0].mxu0
        %2456 = vmatprep.mubr.bf16.mxu0 %v2122
        %2457 = vmatmul.mubr.bf16.gmra.mrb[0].mxu0 %v2121
        %v2458 = vpop.f32.mrb[0].mxu0
        %v2459 = vadd.f32 %v2298, %v2458
        %v2460 = vpop.f32.mrb[0].mxu0
        %v2461 = vpop.f32.mrb[0].mxu0
        %v2462 = vadd.f32 %v2301, %v2461
        %v2463 = vpop.f32.mrb[0].mxu0
        %2464 = vmatprep.mubr.bf16.mxu0 %v2126
        %2465 = vmatmul.mubr.bf16.gmra.mrb[0].mxu0 %v2125
        %v2466 = vpop.f32.mrb[0].mxu0
        %v2467 = vadd.f32 %v2306, %v2466
        %v2468 = vpop.f32.mrb[0].mxu0
        %v2469 = vpop.f32.mrb[0].mxu0
        %v2470 = vadd.f32 %v2309, %v2469
        %v2471 = vpop.f32.mrb[0].mxu0
        %2472 = vmatprep.mubr.bf16.mxu0 %v2130
        %2473 = vmatmul.mubr.bf16.gmra.mrb[0].mxu0 %v2129
        %v2474 = vpop.f32.mrb[0].mxu0
        %v2475 = vadd.f32 %v2314, %v2474
        %v2476 = vpop.f32.mrb[0].mxu0
        %v2477 = vpop.f32.mrb[0].mxu0
        %v2478 = vadd.f32 %v2317, %v2477
        %v2479 = vpop.f32.mrb[0].mxu0
        %2480 = vmatprep.mubr.bf16.mxu0 %v2134
        %2481 = vmatmul.mubr.bf16.gmra.mrb[0].mxu0 %v2133
        %v2482 = vpop.f32.mrb[0].mxu0
        %v2483 = vadd.f32 %v2322, %v2482
        %v2484 = vpop.f32.mrb[0].mxu0
        %v2485 = vpop.f32.mrb[0].mxu0
        %v2486 = vadd.f32 %v2325, %v2485
        %v2487 = vpop.f32.mrb[0].mxu0
        %2488 = vmatprep.mubr.bf16.mxu0 %v2138
        %2489 = vmatmul.mubr.bf16.gmra.mrb[0].mxu0 %v2137
        %v2490 = vpop.f32.mrb[0].mxu0
        %v2491 = vadd.f32 %v2330, %v2490
        %v2492 = vpop.f32.mrb[0].mxu0
        %v2493 = vpop.f32.mrb[0].mxu0
        %v2494 = vadd.f32 %v2333, %v2493
        %v2495 = vpop.f32.mrb[0].mxu0
        %2496 = vmatprep.mubr.bf16.mxu0 %v2142
        %2497 = vmatmul.mubr.bf16.gmra.mrb[0].mxu0 %v2141
        %v2498 = vpop.f32.mrb[0].mxu0
        %v2499 = vadd.f32 %v2338, %v2498
        %v2500 = vpop.f32.mrb[0].mxu0
        %v2501 = vpop.f32.mrb[0].mxu0
        %v2502 = vadd.f32 %v2341, %v2501
        %v2503 = vpop.f32.mrb[0].mxu0
        %2504 = vmatprep.mubr.bf16.mxu0 %v2146
        %2505 = vmatmul.mubr.bf16.gmra.mrb[0].mxu0 %v2145
        %v2506 = vpop.f32.mrb[0].mxu0
        %v2507 = vadd.f32 %v2346, %v2506
        %v2508 = vpop.f32.mrb[0].mxu0
        %v2509 = vpop.f32.mrb[0].mxu0
        %v2510 = vadd.f32 %v2349, %v2509
        %v2511 = vpop.f32.mrb[0].mxu0
        %2512 = vmatprep.mubr.bf16.mxu0 %v2150
        %2513 = vmatmul.mubr.bf16.gmra.mrb[0].mxu0 %v2149
        %v2514 = vpop.f32.mrb[0].mxu0
        %v2515 = vadd.f32 %v2354, %v2514
        %v2516 = vpop.f32.mrb[0].mxu0
        %v2517 = vpop.f32.mrb[0].mxu0
        %v2518 = vadd.f32 %v2357, %v2517
        %v2519 = vpop.f32.mrb[0].mxu0
        %2520 = vmatprep.mubr.bf16.mxu0 %v2154
        %2521 = vmatmul.mubr.bf16.gmra.mrb[0].mxu0 %v2153
        %v2522 = vpop.f32.mrb[0].mxu0
        %v2523 = vadd.f32 %v2362, %v2522
        %v2524 = vpop.f32.mrb[0].mxu0
        %v2525 = vpop.f32.mrb[0].mxu0
        %v2526 = vadd.f32 %v2365, %v2525
        %v2527 = vpop.f32.mrb[0].mxu0
        %2528 = vmatprep.mubr.bf16.mxu0 %v2158
        %2529 = vmatmul.mubr.bf16.gmra.mrb[0].mxu0 %v2157
        %v2530 = vpop.f32.mrb[0].mxu0
        %v2531 = vadd.f32 %v2370, %v2530
        %v2532 = vpop.f32.mrb[0].mxu0
        %v2533 = vpop.f32.mrb[0].mxu0
        %v2534 = vadd.f32 %v2373, %v2533
        %v2535 = vpop.f32.mrb[0].mxu0
        %2536 = vmatprep.mubr.bf16.mxu0 %v2162
        %2537 = vmatmul.mubr.bf16.gmra.mrb[0].mxu0 %v2161
        %v2538 = vpop.f32.mrb[0].mxu0
        %v2539 = vadd.f32 %v2378, %v2538
        %v2540 = vpop.f32.mrb[0].mxu0
        %v2541 = vpop.f32.mrb[0].mxu0
        %v2542 = vadd.f32 %v2381, %v2541
        %v2543 = vpop.f32.mrb[0].mxu0
        %2544 = vmatprep.mubr.bf16.mxu0 %v2166
        %2545 = vmatmul.mubr.bf16.gmra.mrb[0].mxu0 %v2165
        %v2546 = vpop.f32.mrb[0].mxu0
        %v2547 = vadd.f32 %v2386, %v2546
        %v2548 = vpop.f32.mrb[0].mxu0
        %v2549 = vpop.f32.mrb[0].mxu0
        %v2550 = vadd.f32 %v2389, %v2549
        %v2551 = vpop.f32.mrb[0].mxu0
        %2552 = vdwg.mxu0
        %v2553 = vmax.f32 %v2427, 0.0
        %v2554 = vmax.f32 %v2430, 0.0
        %v2555 = vmax.f32 %v2435, 0.0
        %v2556 = vmax.f32 %v2438, 0.0
        %v2557 = vmax.f32 %v2443, 0.0
        %v2558 = vmax.f32 %v2446, 0.0
        %v2559 = vmax.f32 %v2451, 0.0
        %v2560 = vmax.f32 %v2454, 0.0
        %v2561 = vmax.f32 %v2459, 0.0
        %v2562 = vmax.f32 %v2462, 0.0
        %v2563 = vmax.f32 %v2467, 0.0
        %v2564 = vmax.f32 %v2470, 0.0
        %v2565 = vmax.f32 %v2475, 0.0
        %v2566 = vmax.f32 %v2478, 0.0
        %v2567 = vmax.f32 %v2483, 0.0
        %v2568 = vmax.f32 %v2486, 0.0
        %v2569 = vmax.f32 %v2491, 0.0
        %v2570 = vmax.f32 %v2494, 0.0
        %v2571 = vmax.f32 %v2499, 0.0
        %v2572 = vmax.f32 %v2502, 0.0
        %v2573 = vmax.f32 %v2507, 0.0
        %v2574 = vmax.f32 %v2510, 0.0
        %v2575 = vmax.f32 %v2515, 0.0
        %v2576 = vmax.f32 %v2518, 0.0
        %v2577 = vmax.f32 %v2523, 0.0
        %v2578 = vmax.f32 %v2526, 0.0
        %v2579 = vmax.f32 %v2531, 0.0
        %v2580 = vmax.f32 %v2534, 0.0
        %v2581 = vmax.f32 %v2539, 0.0
        %v2582 = vmax.f32 %v2542, 0.0
        %v2583 = vmax.f32 %v2547, 0.0
        %v2584 = vmax.f32 %v2550, 0.0
        %v2585 = vpack.c.bf16 %v2554, %v2553
        %v2586 = vpack.c.bf16 %v2556, %v2555
        %v2587 = vpack.c.bf16 %v2558, %v2557
        %v2588 = vpack.c.bf16 %v2560, %v2559
        %v2589 = vpack.c.bf16 %v2562, %v2561
        %v2590 = vpack.c.bf16 %v2564, %v2563
        %v2591 = vpack.c.bf16 %v2566, %v2565
        %v2592 = vpack.c.bf16 %v2568, %v2567
        %v2593 = vpack.c.bf16 %v2570, %v2569
        %v2594 = vpack.c.bf16 %v2572, %v2571
        %v2595 = vpack.c.bf16 %v2574, %v2573
        %v2596 = vpack.c.bf16 %v2576, %v2575
        %v2597 = vpack.c.bf16 %v2578, %v2577
        %v2598 = vpack.c.bf16 %v2580, %v2579
        %v2599 = vpack.c.bf16 %v2582, %v2581
        %v2600 = vpack.c.bf16 %v2584, %v2583
        %v2601 = vld [vmem:[%s5] sm:$0xff]
        %v2602 = vld [vmem:[%s5 + $0x8] sm:$0xff]
        %v2603 = vld [vmem:[%s5 + $0x10] sm:$0xff]
        %v2604 = vld [vmem:[%s5 + $0x18] sm:$0xff]
        %v2605 = vld [vmem:[%s5 + $0x20] sm:$0xff]
        %v2606 = vld [vmem:[%s5 + $0x28] sm:$0xff]
        %v2607 = vld [vmem:[%s5 + $0x30] sm:$0xff]
        %v2608 = vld [vmem:[%s5 + $0x38] sm:$0xff]
        %v2609 = vld [vmem:[%s5 + $0x40] sm:$0xff]
        %v2610 = vld [vmem:[%s5 + $0x48] sm:$0xff]
        %v2611 = vld [vmem:[%s5 + $0x50] sm:$0xff]
        %v2612 = vld [vmem:[%s5 + $0x58] sm:$0xff]
        %v2613 = vld [vmem:[%s5 + $0x60] sm:$0xff]
        %v2614 = vld [vmem:[%s5 + $0x68] sm:$0xff]
        %v2615 = vld [vmem:[%s5 + $0x70] sm:$0xff]
        %v2616 = vld [vmem:[%s5 + $0x78] sm:$0xff]
        %v2617 = vld [vmem:[%s6] sm:$0xff]
        %v2618 = vld [vmem:[%s6 + $0x8] sm:$0xff]
        %v2619 = vld [vmem:[%s6 + $0x10] sm:$0xff]
        %v2620 = vld [vmem:[%s6 + $0x18] sm:$0xff]
        %v2621 = vld [vmem:[%s6 + $0x20] sm:$0xff]
        %v2622 = vld [vmem:[%s6 + $0x28] sm:$0xff]
        %v2623 = vld [vmem:[%s6 + $0x30] sm:$0xff]
        %v2624 = vld [vmem:[%s6 + $0x38] sm:$0xff]
        %v2625 = vld [vmem:[%s6 + $0x40] sm:$0xff]
        %v2626 = vld [vmem:[%s6 + $0x48] sm:$0xff]
        %v2627 = vld [vmem:[%s6 + $0x50] sm:$0xff]
        %v2628 = vld [vmem:[%s6 + $0x58] sm:$0xff]
        %v2629 = vld [vmem:[%s6 + $0x60] sm:$0xff]
        %v2630 = vld [vmem:[%s6 + $0x68] sm:$0xff]
        %v2631 = vld [vmem:[%s6 + $0x70] sm:$0xff]
        %v2632 = vld [vmem:[%s6 + $0x78] sm:$0xff]
        %2634 = vset.pattern.permute.xlu0 0
        %2635 = vperm.xlu0 %2634, %v2617
        %v2636 = vpop.permute.xlu0 %2635
        %2639 = vset.pattern.permute.xlu0 0
        %2640 = vperm.xlu0 %2639, %v2618
        %v2641 = vpop.permute.xlu0 %2640
        %2644 = vset.pattern.permute.xlu0 0
        %2645 = vperm.xlu0 %2644, %v2619
        %v2646 = vpop.permute.xlu0 %2645
        %2649 = vset.pattern.permute.xlu0 0
        %2650 = vperm.xlu0 %2649, %v2620
        %v2651 = vpop.permute.xlu0 %2650
        %2654 = vset.pattern.permute.xlu0 0
        %2655 = vperm.xlu0 %2654, %v2621
        %v2656 = vpop.permute.xlu0 %2655
        %2659 = vset.pattern.permute.xlu0 0
        %2660 = vperm.xlu0 %2659, %v2622
        %v2661 = vpop.permute.xlu0 %2660
        %2664 = vset.pattern.permute.xlu0 0
        %2665 = vperm.xlu0 %2664, %v2623
        %v2666 = vpop.permute.xlu0 %2665
        %2669 = vset.pattern.permute.xlu0 0
        %2670 = vperm.xlu0 %2669, %v2624
        %v2671 = vpop.permute.xlu0 %2670
        %2674 = vset.pattern.permute.xlu0 0
        %2675 = vperm.xlu0 %2674, %v2625
        %v2676 = vpop.permute.xlu0 %2675
        %2679 = vset.pattern.permute.xlu0 0
        %2680 = vperm.xlu0 %2679, %v2626
        %v2681 = vpop.permute.xlu0 %2680
        %2684 = vset.pattern.permute.xlu0 0
        %2685 = vperm.xlu0 %2684, %v2627
        %v2686 = vpop.permute.xlu0 %2685
        %2689 = vset.pattern.permute.xlu0 0
        %2690 = vperm.xlu0 %2689, %v2628
        %v2691 = vpop.permute.xlu0 %2690
        %2694 = vset.pattern.permute.xlu0 0
        %2695 = vperm.xlu0 %2694, %v2629
        %v2696 = vpop.permute.xlu0 %2695
        %2699 = vset.pattern.permute.xlu0 0
        %2700 = vperm.xlu0 %2699, %v2630
        %v2701 = vpop.permute.xlu0 %2700
        %2704 = vset.pattern.permute.xlu0 0
        %2705 = vperm.xlu0 %2704, %v2631
        %v2706 = vpop.permute.xlu0 %2705
        %2709 = vset.pattern.permute.xlu0 0
        %2710 = vperm.xlu0 %2709, %v2632
        %v2711 = vpop.permute.xlu0 %2710
        %v2729 = vunpack.c.l.b16 %v2601
        %v2730 = vunpack.c.h.b16 %v2601
        %v2731 = vunpack.c.l.b16 %v2602
        %v2732 = vunpack.c.h.b16 %v2602
        %v2733 = vunpack.c.l.b16 %v2603
        %v2734 = vunpack.c.h.b16 %v2603
        %v2735 = vunpack.c.l.b16 %v2604
        %v2736 = vunpack.c.h.b16 %v2604
        %v2737 = vunpack.c.l.b16 %v2605
        %v2738 = vunpack.c.h.b16 %v2605
        %v2739 = vunpack.c.l.b16 %v2606
        %v2740 = vunpack.c.h.b16 %v2606
        %v2741 = vunpack.c.l.b16 %v2607
        %v2742 = vunpack.c.h.b16 %v2607
        %v2743 = vunpack.c.l.b16 %v2608
        %v2744 = vunpack.c.h.b16 %v2608
        %v2745 = vunpack.c.l.b16 %v2609
        %v2746 = vunpack.c.h.b16 %v2609
        %v2747 = vunpack.c.l.b16 %v2610
        %v2748 = vunpack.c.h.b16 %v2610
        %v2749 = vunpack.c.l.b16 %v2611
        %v2750 = vunpack.c.h.b16 %v2611
        %v2751 = vunpack.c.l.b16 %v2612
        %v2752 = vunpack.c.h.b16 %v2612
        %v2753 = vunpack.c.l.b16 %v2613
        %v2754 = vunpack.c.h.b16 %v2613
        %v2755 = vunpack.c.l.b16 %v2614
        %v2756 = vunpack.c.h.b16 %v2614
        %v2757 = vunpack.c.l.b16 %v2615
        %v2758 = vunpack.c.h.b16 %v2615
        %v2759 = vunpack.c.l.b16 %v2616
        %v2760 = vunpack.c.h.b16 %v2616
        %v2761 = vpack.c.b16 %v2731, %v2729
        %v2762 = vpack.c.b16 %v2732, %v2730
        %v2763 = vpack.c.b16 %v2735, %v2733
        %v2764 = vpack.c.b16 %v2736, %v2734
        %v2765 = vpack.c.b16 %v2739, %v2737
        %v2766 = vpack.c.b16 %v2740, %v2738
        %v2767 = vpack.c.b16 %v2743, %v2741
        %v2768 = vpack.c.b16 %v2744, %v2742
        %v2769 = vpack.c.b16 %v2747, %v2745
        %v2770 = vpack.c.b16 %v2748, %v2746
        %v2771 = vpack.c.b16 %v2751, %v2749
        %v2772 = vpack.c.b16 %v2752, %v2750
        %v2773 = vpack.c.b16 %v2755, %v2753
        %v2774 = vpack.c.b16 %v2756, %v2754
        %v2775 = vpack.c.b16 %v2759, %v2757
        %v2776 = vpack.c.b16 %v2760, %v2758
        %2793 = vmatprep.subr.bf16.mxu0 0
        %2794 = vmatpush1.bf16.msra.mxu0 %v2585
        %2795 = vmatprep.subr.bf16.mxu0 0
        %2796 = vmatpush1.bf16.msra.mxu0 %v2586
        %2797 = vmatprep.subr.bf16.mxu0 0
        %2798 = vmatpush1.bf16.msra.mxu0 %v2587
        %2799 = vmatprep.subr.bf16.mxu0 0
        %2800 = vmatpush1.bf16.msra.mxu0 %v2588
        %2801 = vmatprep.subr.bf16.mxu0 0
        %2802 = vmatpush1.bf16.msra.mxu0 %v2589
        %2803 = vmatprep.subr.bf16.mxu0 0
        %2804 = vmatpush1.bf16.msra.mxu0 %v2590
        %2805 = vmatprep.subr.bf16.mxu0 0
        %2806 = vmatpush1.bf16.msra.mxu0 %v2591
        %2807 = vmatprep.subr.bf16.mxu0 0
        %2808 = vmatpush1.bf16.msra.mxu0 %v2592
        %2809 = vmatprep.subr.bf16.mxu0 0
        %2810 = vmatpush1.bf16.msra.mxu0 %v2593
        %2811 = vmatprep.subr.bf16.mxu0 0
        %2812 = vmatpush1.bf16.msra.mxu0 %v2594
        %2813 = vmatprep.subr.bf16.mxu0 0
        %2814 = vmatpush1.bf16.msra.mxu0 %v2595
        %2815 = vmatprep.subr.bf16.mxu0 0
        %2816 = vmatpush1.bf16.msra.mxu0 %v2596
        %2817 = vmatprep.subr.bf16.mxu0 0
        %2818 = vmatpush1.bf16.msra.mxu0 %v2597
        %2819 = vmatprep.subr.bf16.mxu0 0
        %2820 = vmatpush1.bf16.msra.mxu0 %v2598
        %2821 = vmatprep.subr.bf16.mxu0 0
        %2822 = vmatpush1.bf16.msra.mxu0 %v2599
        %2823 = vmatprep.subr.bf16.mxu0 0
        %2824 = vmatpush1.bf16.msra.mxu0 %v2600
        %2825 = vmatprep.mubr.bf16.mxu0 %v2762
        %2826 = vmatmul.mubr.bf16.gmra.mrb[0].mxu0 %v2761
        %v2827 = vpop.f32.mrb[0].mxu0
        %v2828 = vadd.f32 %v2636, %v2827
        %v2829 = vpop.f32.mrb[0].mxu0
        %v2830 = vpop.f32.mrb[0].mxu0
        %v2831 = vadd.f32 %v2641, %v2830
        %v2832 = vpop.f32.mrb[0].mxu0
        %2833 = vmatprep.mubr.bf16.mxu0 %v2764
        %2834 = vmatmul.mubr.bf16.gmra.mrb[0].mxu0 %v2763
        %v2835 = vpop.f32.mrb[0].mxu0
        %v2836 = vadd.f32 %v2646, %v2835
        %v2837 = vpop.f32.mrb[0].mxu0
        %v2838 = vpop.f32.mrb[0].mxu0
        %v2839 = vadd.f32 %v2651, %v2838
        %v2840 = vpop.f32.mrb[0].mxu0
        %2841 = vmatprep.mubr.bf16.mxu0 %v2766
        %2842 = vmatmul.mubr.bf16.gmra.mrb[0].mxu0 %v2765
        %v2843 = vpop.f32.mrb[0].mxu0
        %v2844 = vadd.f32 %v2656, %v2843
        %v2845 = vpop.f32.mrb[0].mxu0
        %v2846 = vpop.f32.mrb[0].mxu0
        %v2847 = vadd.f32 %v2661, %v2846
        %v2848 = vpop.f32.mrb[0].mxu0
        %2849 = vmatprep.mubr.bf16.mxu0 %v2768
        %2850 = vmatmul.mubr.bf16.gmra.mrb[0].mxu0 %v2767
        %v2851 = vpop.f32.mrb[0].mxu0
        %v2852 = vadd.f32 %v2666, %v2851
        %v2853 = vpop.f32.mrb[0].mxu0
        %v2854 = vpop.f32.mrb[0].mxu0
        %v2855 = vadd.f32 %v2671, %v2854
        %v2856 = vpop.f32.mrb[0].mxu0
        %2857 = vmatprep.mubr.bf16.mxu0 %v2770
        %2858 = vmatmul.mubr.bf16.gmra.mrb[0].mxu0 %v2769
        %v2859 = vpop.f32.mrb[0].mxu0
        %v2860 = vadd.f32 %v2676, %v2859
        %v2861 = vpop.f32.mrb[0].mxu0
        %v2862 = vpop.f32.mrb[0].mxu0
        %v2863 = vadd.f32 %v2681, %v2862
        %v2864 = vpop.f32.mrb[0].mxu0
        %2865 = vmatprep.mubr.bf16.mxu0 %v2772
        %2866 = vmatmul.mubr.bf16.gmra.mrb[0].mxu0 %v2771
        %v2867 = vpop.f32.mrb[0].mxu0
        %v2868 = vadd.f32 %v2686, %v2867
        %v2869 = vpop.f32.mrb[0].mxu0
        %v2870 = vpop.f32.mrb[0].mxu0
        %v2871 = vadd.f32 %v2691, %v2870
        %v2872 = vpop.f32.mrb[0].mxu0
        %2873 = vmatprep.mubr.bf16.mxu0 %v2774
        %2874 = vmatmul.mubr.bf16.gmra.mrb[0].mxu0 %v2773
        %v2875 = vpop.f32.mrb[0].mxu0
        %v2876 = vadd.f32 %v2696, %v2875
        %v2877 = vpop.f32.mrb[0].mxu0
        %v2878 = vpop.f32.mrb[0].mxu0
        %v2879 = vadd.f32 %v2701, %v2878
        %v2880 = vpop.f32.mrb[0].mxu0
        %2881 = vmatprep.mubr.bf16.mxu0 %v2776
        %2882 = vmatmul.mubr.bf16.gmra.mrb[0].mxu0 %v2775
        %v2883 = vpop.f32.mrb[0].mxu0
        %v2884 = vadd.f32 %v2706, %v2883
        %v2885 = vpop.f32.mrb[0].mxu0
        %v2886 = vpop.f32.mrb[0].mxu0
        %v2887 = vadd.f32 %v2711, %v2886
        %v2888 = vpop.f32.mrb[0].mxu0
        %2889 = vdwg.mxu0
        %v2890 = vmax.f32 %v2828, 0.0
        %v2891 = vmax.f32 %v2831, 0.0
        %v2892 = vmax.f32 %v2836, 0.0
        %v2893 = vmax.f32 %v2839, 0.0
        %v2894 = vmax.f32 %v2844, 0.0
        %v2895 = vmax.f32 %v2847, 0.0
        %v2896 = vmax.f32 %v2852, 0.0
        %v2897 = vmax.f32 %v2855, 0.0
        %v2898 = vmax.f32 %v2860, 0.0
        %v2899 = vmax.f32 %v2863, 0.0
        %v2900 = vmax.f32 %v2868, 0.0
        %v2901 = vmax.f32 %v2871, 0.0
        %v2902 = vmax.f32 %v2876, 0.0
        %v2903 = vmax.f32 %v2879, 0.0
        %v2904 = vmax.f32 %v2884, 0.0
        %v2905 = vmax.f32 %v2887, 0.0
        %v2906 = vpack.c.bf16 %v2891, %v2890
        %v2907 = vpack.c.bf16 %v2893, %v2892
        %v2908 = vpack.c.bf16 %v2895, %v2894
        %v2909 = vpack.c.bf16 %v2897, %v2896
        %v2910 = vpack.c.bf16 %v2899, %v2898
        %v2911 = vpack.c.bf16 %v2901, %v2900
        %v2912 = vpack.c.bf16 %v2903, %v2902
        %v2913 = vpack.c.bf16 %v2905, %v2904
        %v2914 = vld [vmem:[%s7] sm:$0xf]
        %v2915 = vld [vmem:[%s7 + $0x4] sm:$0xf]
        %v2916 = vld [vmem:[%s7 + $0x8] sm:$0xf]
        %v2917 = vld [vmem:[%s7 + $0xc] sm:$0xf]
        %v2918 = vld [vmem:[%s7 + $0x10] sm:$0xf]
        %v2919 = vld [vmem:[%s7 + $0x14] sm:$0xf]
        %v2920 = vld [vmem:[%s7 + $0x18] sm:$0xf]
        %v2921 = vld [vmem:[%s7 + $0x1c] sm:$0xf]
        %v2922 = vld [vmem:[%s8] sm:$0xff]
        %v2923 = vld [vmem:[%s8 + $0x8] sm:$0xff]
        %v2924 = vld [vmem:[%s8 + $0x10] sm:$0xff]
        %v2925 = vld [vmem:[%s8 + $0x18] sm:$0xff]
        %v2926 = vld [vmem:[%s8 + $0x20] sm:$0xff]
        %v2927 = vld [vmem:[%s8 + $0x28] sm:$0xff]
        %v2928 = vld [vmem:[%s8 + $0x30] sm:$0xff]
        %v2929 = vld [vmem:[%s8 + $0x38] sm:$0xff]
        %2931 = vset.pattern.permute.xlu0 0
        %2932 = vperm.xlu0 %2931, %v2922
        %v2933 = vpop.permute.xlu0 %2932
        %2936 = vset.pattern.permute.xlu0 0
        %2937 = vperm.xlu0 %2936, %v2923
        %v2938 = vpop.permute.xlu0 %2937
        %2941 = vset.pattern.permute.xlu0 0
        %2942 = vperm.xlu0 %2941, %v2924
        %v2943 = vpop.permute.xlu0 %2942
        %2946 = vset.pattern.permute.xlu0 0
        %2947 = vperm.xlu0 %2946, %v2925
        %v2948 = vpop.permute.xlu0 %2947
        %2951 = vset.pattern.permute.xlu0 0
        %2952 = vperm.xlu0 %2951, %v2926
        %v2953 = vpop.permute.xlu0 %2952
        %2956 = vset.pattern.permute.xlu0 0
        %2957 = vperm.xlu0 %2956, %v2927
        %v2958 = vpop.permute.xlu0 %2957
        %2961 = vset.pattern.permute.xlu0 0
        %2962 = vperm.xlu0 %2961, %v2928
        %v2963 = vpop.permute.xlu0 %2962
        %2966 = vset.pattern.permute.xlu0 0
        %2967 = vperm.xlu0 %2966, %v2929
        %v2968 = vpop.permute.xlu0 %2967
        %v2978 = vunpack.c.l.b16 %v2914
        %v2979 = vunpack.c.l.b16 %v2915
        %v2980 = vunpack.c.l.b16 %v2916
        %v2981 = vunpack.c.l.b16 %v2917
        %v2982 = vunpack.c.l.b16 %v2918
        %v2983 = vunpack.c.l.b16 %v2919
        %v2984 = vunpack.c.l.b16 %v2920
        %v2985 = vunpack.c.l.b16 %v2921
        %v2986 = vpack.c.b16 %v2979, %v2978
        %v2987 = vpack.c.b16 %v2981, %v2980
        %v2988 = vpack.c.b16 %v2983, %v2982
        %v2989 = vpack.c.b16 %v2985, %v2984
        %2994 = vmatprep.subr.bf16.mxu0 0
        %2995 = vmatpush1.bf16.msra.mxu0 %v2906
        %2996 = vmatprep.subr.bf16.mxu0 0
        %2997 = vmatpush1.bf16.msra.mxu0 %v2907
        %2998 = vmatprep.subr.bf16.mxu0 0
        %2999 = vmatpush1.bf16.msra.mxu0 %v2908
        %3000 = vmatprep.subr.bf16.mxu0 0
        %3001 = vmatpush1.bf16.msra.mxu0 %v2909
        %3002 = vmatprep.subr.bf16.mxu0 0
        %3003 = vmatpush1.bf16.msra.mxu0 %v2910
        %3004 = vmatprep.subr.bf16.mxu0 0
        %3005 = vmatpush1.bf16.msra.mxu0 %v2911
        %3006 = vmatprep.subr.bf16.mxu0 0
        %3007 = vmatpush1.bf16.msra.mxu0 %v2912
        %3008 = vmatprep.subr.bf16.mxu0 0
        %3009 = vmatpush1.bf16.msra.mxu0 %v2913
        %3010 = vmatprep.subr.bf16.mxu0 0
        %3011 = vmatpush1.bf16.msra.mxu0 0
        %3012 = vmatprep.subr.bf16.mxu0 0
        %3013 = vmatpush1.bf16.msra.mxu0 0
        %3014 = vmatprep.subr.bf16.mxu0 0
        %3015 = vmatpush1.bf16.msra.mxu0 0
        %3016 = vmatprep.subr.bf16.mxu0 0
        %3017 = vmatpush1.bf16.msra.mxu0 0
        %3018 = vmatprep.subr.bf16.mxu0 0
        %3019 = vmatpush1.bf16.msra.mxu0 0
        %3020 = vmatprep.subr.bf16.mxu0 0
        %3021 = vmatpush1.bf16.msra.mxu0 0
        %3022 = vmatprep.subr.bf16.mxu0 0
        %3023 = vmatpush1.bf16.msra.mxu0 0
        %3024 = vmatprep.subr.bf16.mxu0 0
        %3025 = vmatpush1.bf16.msra.mxu0 0
        %3026 = vmatprep.mubr.bf16.mxu0 0
        %3027 = vmatmul.mubr.bf16.gmra.mrb[0].mxu0 %v2986
        %v3028 = vpop.f32.mrb[0].mxu0
        %v3029 = vadd.f32 %v2933, %v3028
        %v3030 = vpop.f32.mrb[0].mxu0
        %v3031 = vpop.f32.mrb[0].mxu0
        %v3032 = vadd.f32 %v2938, %v3031
        %v3033 = vpop.f32.mrb[0].mxu0
        %3034 = vmatprep.mubr.bf16.mxu0 0
        %3035 = vmatmul.mubr.bf16.gmra.mrb[0].mxu0 %v2987
        %v3036 = vpop.f32.mrb[0].mxu0
        %v3037 = vadd.f32 %v2943, %v3036
        %v3038 = vpop.f32.mrb[0].mxu0
        %v3039 = vpop.f32.mrb[0].mxu0
        %v3040 = vadd.f32 %v2948, %v3039
        %v3041 = vpop.f32.mrb[0].mxu0
        %3042 = vmatprep.mubr.bf16.mxu0 0
        %3043 = vmatmul.mubr.bf16.gmra.mrb[0].mxu0 %v2988
        %v3044 = vpop.f32.mrb[0].mxu0
        %v3045 = vadd.f32 %v2953, %v3044
        %v3046 = vpop.f32.mrb[0].mxu0
        %v3047 = vpop.f32.mrb[0].mxu0
        %v3048 = vadd.f32 %v2958, %v3047
        %v3049 = vpop.f32.mrb[0].mxu0
        %3050 = vmatprep.mubr.bf16.mxu0 0
        %3051 = vmatmul.mubr.bf16.gmra.mrb[0].mxu0 %v2989
        %v3052 = vpop.f32.mrb[0].mxu0
        %v3053 = vadd.f32 %v2963, %v3052
        %v3054 = vpop.f32.mrb[0].mxu0
        %v3055 = vpop.f32.mrb[0].mxu0
        %v3056 = vadd.f32 %v2968, %v3055
        %v3057 = vpop.f32.mrb[0].mxu0
        %3058 = vdwg.mxu0
        %v3059 = vmax.f32 %v3029, 0.0
        %v3060 = vmax.f32 %v3032, 0.0
        %v3061 = vmax.f32 %v3037, 0.0
        %v3062 = vmax.f32 %v3040, 0.0
        %v3063 = vmax.f32 %v3045, 0.0
        %v3064 = vmax.f32 %v3048, 0.0
        %v3065 = vmax.f32 %v3053, 0.0
        %v3066 = vmax.f32 %v3056, 0.0
        %v3067 = vpack.c.bf16 %v3060, %v3059
        %v3068 = vpack.c.bf16 %v3062, %v3061
        %v3069 = vpack.c.bf16 %v3064, %v3063
        %v3070 = vpack.c.bf16 %v3066, %v3065
        %v3071 = vld [vmem:[%s9] sm:$0xf]
        %v3072 = vld [vmem:[%s9 + $0x4] sm:$0xf]
        %v3073 = vld [vmem:[%s9 + $0x8] sm:$0xf]
        %v3074 = vld [vmem:[%s9 + $0xc] sm:$0xf]
        %v3075 = vld [vmem:[%s10] sm:$0xff]
        %v3076 = vld [vmem:[%s10 + $0x8] sm:$0xff]
        %v3077 = vld [vmem:[%s10 + $0x10] sm:$0xff]
        %v3078 = vld [vmem:[%s10 + $0x18] sm:$0xff]
        %3080 = vset.pattern.permute.xlu0 0
        %3081 = vperm.xlu0 %3080, %v3075
        %v3082 = vpop.permute.xlu0 %3081
        %3085 = vset.pattern.permute.xlu0 0
        %3086 = vperm.xlu0 %3085, %v3076
        %v3087 = vpop.permute.xlu0 %3086
        %3090 = vset.pattern.permute.xlu0 0
        %3091 = vperm.xlu0 %3090, %v3077
        %v3092 = vpop.permute.xlu0 %3091
        %3095 = vset.pattern.permute.xlu0 0
        %3096 = vperm.xlu0 %3095, %v3078
        %v3097 = vpop.permute.xlu0 %3096
        %v3103 = vunpack.c.l.b16 %v3071
        %v3104 = vunpack.c.l.b16 %v3072
        %v3105 = vunpack.c.l.b16 %v3073
        %v3106 = vunpack.c.l.b16 %v3074
        %v3107 = vpack.c.b16 %v3104, %v3103
        %v3108 = vpack.c.b16 %v3106, %v3105
        %vm3109 = vcmask 523264
        %v3111 = vsel %vm3109, %v3107, 0
        %v3114 = vsel %vm3109, %v3108, 0
        %3116 = vmatprep.subr.bf16.mxu0 0
        %3117 = vmatpush1.bf16.msra.mxu0 %v3067
        %3118 = vmatprep.subr.bf16.mxu0 0
        %3119 = vmatpush1.bf16.msra.mxu0 %v3068
        %3120 = vmatprep.subr.bf16.mxu0 0
        %3121 = vmatpush1.bf16.msra.mxu0 %v3069
        %3122 = vmatprep.subr.bf16.mxu0 0
        %3123 = vmatpush1.bf16.msra.mxu0 %v3070
        %3124 = vmatprep.subr.bf16.mxu0 0
        %3125 = vmatpush1.bf16.msra.mxu0 0
        %3126 = vmatprep.subr.bf16.mxu0 0
        %3127 = vmatpush1.bf16.msra.mxu0 0
        %3128 = vmatprep.subr.bf16.mxu0 0
        %3129 = vmatpush1.bf16.msra.mxu0 0
        %3130 = vmatprep.subr.bf16.mxu0 0
        %3131 = vmatpush1.bf16.msra.mxu0 0
        %3132 = vmatprep.subr.bf16.mxu0 0
        %3133 = vmatpush1.bf16.msra.mxu0 0
        %3134 = vmatprep.subr.bf16.mxu0 0
        %3135 = vmatpush1.bf16.msra.mxu0 0
        %3136 = vmatprep.subr.bf16.mxu0 0
        %3137 = vmatpush1.bf16.msra.mxu0 0
        %3138 = vmatprep.subr.bf16.mxu0 0
        %3139 = vmatpush1.bf16.msra.mxu0 0
        %3140 = vmatprep.subr.bf16.mxu0 0
        %3141 = vmatpush1.bf16.msra.mxu0 0
        %3142 = vmatprep.subr.bf16.mxu0 0
        %3143 = vmatpush1.bf16.msra.mxu0 0
        %3144 = vmatprep.subr.bf16.mxu0 0
        %3145 = vmatpush1.bf16.msra.mxu0 0
        %3146 = vmatprep.subr.bf16.mxu0 0
        %3147 = vmatpush1.bf16.msra.mxu0 0
        %3148 = vmatprep.mubr.bf16.mxu0 0
        %3149 = vmatmul.mubr.bf16.gmra.mrb[0].mxu0 %v3111
        %v3150 = vpop.f32.mrb[0].mxu0
        %v3151 = vadd.f32 %v3082, %v3150
        %v3152 = vpop.f32.mrb[0].mxu0
        %v3153 = vpop.f32.mrb[0].mxu0
        %v3154 = vadd.f32 %v3087, %v3153
        %v3155 = vpop.f32.mrb[0].mxu0
        %3156 = vmatprep.mubr.bf16.mxu0 0
        %3157 = vmatmul.mubr.bf16.gmra.mrb[0].mxu0 %v3114
        %v3158 = vpop.f32.mrb[0].mxu0
        %v3159 = vadd.f32 %v3092, %v3158
        %v3160 = vpop.f32.mrb[0].mxu0
        %v3161 = vpop.f32.mrb[0].mxu0
        %v3162 = vadd.f32 %v3097, %v3161
        %v3163 = vpop.f32.mrb[0].mxu0
        %3164 = vdwg.mxu0
        %v3165 = vmax.f32 %v3151, 0.0
        %v3166 = vmax.f32 %v3154, 0.0
        %v3167 = vmax.f32 %v3159, 0.0
        %v3168 = vmax.f32 %v3162, 0.0
        %v3169 = vpack.c.bf16 %v3166, %v3165
        %v3170 = vpack.c.bf16 %v3168, %v3167
        %v3171 = vld [vmem:[%s11] sm:$0xf]
        %v3172 = vld [vmem:[%s11 + $0x4] sm:$0xf]
        %v3173 = vld [vmem:[%s12] sm:$0xff]
        %v3174 = vld [vmem:[%s12 + $0x8] sm:$0xff]
        %3176 = vset.pattern.permute.xlu0 0
        %3177 = vperm.xlu0 %3176, %v3173
        %v3178 = vpop.permute.xlu0 %3177
        %3181 = vset.pattern.permute.xlu0 0
        %3182 = vperm.xlu0 %3181, %v3174
        %v3183 = vpop.permute.xlu0 %3182
        %v3187 = vunpack.c.l.b16 %v3171
        %v3188 = vunpack.c.l.b16 %v3172
        %v3189 = vpack.c.b16 %v3188, %v3187
        %v3191 = vsel %vm1149, %v3189, 0
        %3193 = vmatprep.subr.bf16.mxu0 0
        %3194 = vmatpush1.bf16.msra.mxu0 %v3169
        %3195 = vmatprep.subr.bf16.mxu0 0
        %3196 = vmatpush1.bf16.msra.mxu0 %v3170
        %3197 = vmatprep.subr.bf16.mxu0 0
        %3198 = vmatpush1.bf16.msra.mxu0 0
        %3199 = vmatprep.subr.bf16.mxu0 0
        %3200 = vmatpush1.bf16.msra.mxu0 0
        %3201 = vmatprep.subr.bf16.mxu0 0
        %3202 = vmatpush1.bf16.msra.mxu0 0
        %3203 = vmatprep.subr.bf16.mxu0 0
        %3204 = vmatpush1.bf16.msra.mxu0 0
        %3205 = vmatprep.subr.bf16.mxu0 0
        %3206 = vmatpush1.bf16.msra.mxu0 0
        %3207 = vmatprep.subr.bf16.mxu0 0
        %3208 = vmatpush1.bf16.msra.mxu0 0
        %3209 = vmatprep.subr.bf16.mxu0 0
        %3210 = vmatpush1.bf16.msra.mxu0 0
        %3211 = vmatprep.subr.bf16.mxu0 0
        %3212 = vmatpush1.bf16.msra.mxu0 0
        %3213 = vmatprep.subr.bf16.mxu0 0
        %3214 = vmatpush1.bf16.msra.mxu0 0
        %3215 = vmatprep.subr.bf16.mxu0 0
        %3216 = vmatpush1.bf16.msra.mxu0 0
        %3217 = vmatprep.subr.bf16.mxu0 0
        %3218 = vmatpush1.bf16.msra.mxu0 0
        %3219 = vmatprep.subr.bf16.mxu0 0
        %3220 = vmatpush1.bf16.msra.mxu0 0
        %3221 = vmatprep.subr.bf16.mxu0 0
        %3222 = vmatpush1.bf16.msra.mxu0 0
        %3223 = vmatprep.subr.bf16.mxu0 0
        %3224 = vmatpush1.bf16.msra.mxu0 0
        %3225 = vmatprep.mubr.bf16.mxu0 0
        %3226 = vmatmul.mubr.bf16.gmra.mrb[0].mxu0 %v3191
        %v3227 = vpop.f32.mrb[0].mxu0
        %v3228 = vadd.f32 %v3178, %v3227
        %v3229 = vpop.f32.mrb[0].mxu0
        %v3230 = vpop.f32.mrb[0].mxu0
        %v3231 = vadd.f32 %v3183, %v3230
        %v3232 = vpop.f32.mrb[0].mxu0
        %3233 = vdwg.mxu0
        %v3234 = vmax.f32 %v3228, 0.0
        %v3235 = vmax.f32 %v3231, 0.0
        %v3236 = vld [vmem:[%s13] sm:$0xff]
        %v3237 = vld [vmem:[%s13 + $0x8] sm:$0xff]
        %3239 = vset.pattern.permute.xlu0 0
        %3240 = vperm.xlu0 %3239, %v3236
        %v3241 = vpop.permute.xlu0 %3240
        %3244 = vset.pattern.permute.xlu0 0
        %3245 = vperm.xlu0 %3244, %v3237
        %v3246 = vpop.permute.xlu0 %3245
        %v3248 = vmul.f32 %v3234, %v3241
        %v3249 = vmul.f32 %v3235, %v3246
        %v3250 = vadd.f32 %v3248, %v3249
        %v3251 = vrot.slane %v3250, 4
        %v3252 = vadd.f32 %v3250, %v3251
        %v3253 = vrot.slane %v3252, 2
        %v3254 = vadd.f32 %v3252, %v3253
        %v3255 = vrot.slane %v3254, 1
        %v3256 = vadd.f32 %v3254, %v3255
        %v3257 = vld [vmem:[#allocation2] sm:$0x1]
        %3259 = vset.pattern.permute.xlu0 0
        %3260 = vperm.xlu0 %3259, %v3257
        %v3261 = vpop.permute.xlu0 %3260
        %v3263 = vlaneseq
        %v3264 = vshrl.u32 %v3263, 7
        %v3265 = vsub.s32 0, %v3264
        %v3266 = vrot.slane %v3261, %v3265
        %v3267 = vadd.f32 %v3256, %v3266
        %3268 = vst [vmem:[%s501] sm:$0x1] %v3267
        %s3269 = sand.u32 %s359, 1
        %s3270 = scalar_lea.sflag [#allocation4], %s3269
        %s3271 = sand.u32 %s359, 1
        %s3272 = scalar_lea.vmem [#allocation3], %s3271
        // Predicated region
        $region81: #{my_model_forward.1} parent=79 // pred_check
          %p3273 = pneg %p369
        $region82: #{my_model_forward.1} parent=79 // pred_check_branch
          %3275 = sbr.rel (%p3273) target = $region84
        $region83: #{my_model_forward.1} parent=79 // pred_region
          %s3277 = ssub.s32 16, 16
          %3278 = vsyncadd %s3270, %s3277
          %s3279 = smul.addr %s31, 16
          %s3280 = scalar_lea.hbm %s15, %s3279
          %s3282 = sshll.u32 %s3272, 4
          %s3283 = int_to_ptr.vmem [resolvable:$true] %s3282
          %3285 = dma.vmem_to_hbm [thread:$0]  %s3283, 16, %s3280, %s3270
        $region84: #{my_model_forward.1} parent=79 // pred_fallthru
          _
      $region80: #{my_model_forward.1} parent=5 // pred_fallthru
        _
      %p3286 = scmp.le.s32.totalorder 2, %s26
      // Predicated region
      $region85: #{my_model_forward.1} parent=5 // pred_check
        %p3287 = pneg %p3286
      $region86: #{my_model_forward.1} parent=5 // pred_check_branch
        %3289 = sbr.rel (%p3287) target = $region88
      $region87: #{my_model_forward.1} parent=5 // pred_region
        %s3290 = ssub.s32 %s26, 2
        // Predicated region
        $region89: #{my_model_forward.1} parent=87 // pred_check
          %p3291 = pneg %p375
        $region90: #{my_model_forward.1} parent=87 // pred_check_branch
          %3293 = sbr.rel (%p3291) target = $region92
        $region91: #{my_model_forward.1} parent=87 // pred_region
          %s3294 = sand.u32 %s360, 1
          %s3295 = scalar_lea.sflag [#allocation4], %s3294
          %s3296 = sand.u32 %s360, 1
          %s3297 = scalar_lea.vmem [#allocation3], %s3296
          %3298 = dma.done %s3295, 16
        $region92: #{my_model_forward.1} parent=87 // pred_fallthru
          _
      $region88: #{my_model_forward.1} parent=5 // pred_fallthru
        _
    $region6: #{my_model_forward.1} parent=1 // loop_footer
      %s30 = sadd.s32 1, %s26
    $region7: #{my_model_forward.1} parent=1 // loop_footer_branch
      %25 = sbr.rel target = $region3
    $region8: #{my_model_forward.1} parent=1 // loop_exit
      _
    %3299 = vsyncpa [#allocation4], 1
    %s3300 = scalar_lea.sflag [#allocation4], 1
    %3301 = vsyncpa %s3300, 1

</llo_original>
